<compile_context>
chip_gen: v7x
topology: tpu7x:2x2x1
jax: 0.10.0
libtpu: 0.0.40
codegen_flags: <defaults>
</compile_context>

<pallas_src>
import functools
import math

import jax
import jax.numpy as jnp
from jax.experimental import pallas as pl
from jax.experimental.pallas import tpu as pltpu

LN_EPS = 1e-5  # nn.LayerNorm default


def _attn_kernel(xq_ref, xkv_ref, wq_ref, bq_ref, wkv_ref, bkv_ref,
                 g_ref, beta_ref, wo_ref, bo_ref, o_ref,
                 *, num_heads, scale, apply_ln):
    # xq_ref : (N,  C)   query tokens for this batch element
    # xkv_ref: (Nk, C)   key/value source tokens (post-sr-conv if sr_ratio>1)
    # wq_ref : (C, C)    q weight, (in, out) layout
    # wkv_ref: (C, 2C)   kv weight, (in, out) layout -- cols [:C]=k, [C:]=v
    # wo_ref : (C, C)    proj weight, (in, out) layout
    xq = xq_ref[...].astype(jnp.float32)
    xkv = xkv_ref[...].astype(jnp.float32)

    if apply_ln:
        # LayerNorm of the spatially-reduced kv source (fused, f32, biased var)
        mu = jnp.mean(xkv, axis=-1, keepdims=True)
        var = jnp.mean(jnp.square(xkv - mu), axis=-1, keepdims=True)
        xkv = (xkv - mu) * jax.lax.rsqrt(var + LN_EPS)
        xkv = xkv * g_ref[...].astype(jnp.float32) + beta_ref[...].astype(jnp.float32)

    # Projections (MXU, f32 accumulation)
    q = jnp.dot(xq, wq_ref[...].astype(jnp.float32),
                preferred_element_type=jnp.float32) + bq_ref[...].astype(jnp.float32)
    kv = jnp.dot(xkv, wkv_ref[...].astype(jnp.float32),
                 preferred_element_type=jnp.float32) + bkv_ref[...].astype(jnp.float32)

    Nq, C = xq.shape
    dh = C // num_heads
    k = kv[:, :C]
    v = kv[:, C:]
    wo = wo_ref[...].astype(jnp.float32)

    # Per-head attention via full-width matmuls + column masks.
    # Masking q (resp. v) with exact zeros outside head h makes the full-C
    # contraction equal the dh-wide per-head contraction bit-for-bit, while
    # keeping every matmul lane-dense (no sub-128 lane slices).
    col = jax.lax.broadcasted_iota(jnp.int32, (1, C), 1)
    acc = jnp.zeros((Nq, C), jnp.float32)
    for h in range(num_heads):
        lo = h * dh
        mh = jnp.where((col >= lo) & (col < lo + dh), 1.0, 0.0).astype(jnp.float32)
        # s[n, m] = sum_d q_h[n, d] * k_h[m, d]
        s = jax.lax.dot_general(q * mh, k, (((1,), (1,)), ((), ())),
                                preferred_element_type=jnp.float32) * scale
        s = s - jnp.max(s, axis=-1, keepdims=True)
        p = jnp.exp(s)
        p = p / jnp.sum(p, axis=-1, keepdims=True)
        # (p @ v_h) has nonzero columns only in head h's slot; multiplying by
        # the full proj weight picks exactly wo[lo:lo+dh, :].
        ov = jnp.dot(p, v * mh, preferred_element_type=jnp.float32)   # (Nq, C)
        acc = acc + jnp.dot(ov, wo, preferred_element_type=jnp.float32)

    o_ref[...] = (acc + bo_ref[...].astype(jnp.float32)).astype(o_ref.dtype)


def mit_attention(x, H, W, params, *, num_heads, sr_ratio=1, qk_scale=None):
    """x: (B, N, C) with N == H*W. Returns (B, N, C)."""
    B, N, C = x.shape
    assert N == H * W
    assert C % num_heads == 0
    dh = C // num_heads
    scale = float(qk_scale) if qk_scale is not None else dh ** (-0.5)

    # torch nn.Linear stores (out, in); transpose to (in, out) for x @ W.
    wq = params["q_w"].T
    bq = params["q_b"].reshape(1, C)
    wkv = params["kv_w"].T                    # (C, 2C): cols [:C]=k, [C:]=v
    bkv = params["kv_b"].reshape(1, 2 * C)
    wo = params["proj_w"].T
    bo = params["proj_b"].reshape(1, C)

    if sr_ratio > 1:
        # TODO(synk): strided spatial-reduction conv stays as plain-JAX glue.
        x_img = x.transpose(0, 2, 1).reshape(B, C, H, W)
        x_sr = jax.lax.conv_general_dilated(
            x_img, params["sr_w"], (sr_ratio, sr_ratio), "VALID",
            dimension_numbers=("NCHW", "OIHW", "NCHW"))
        x_sr = x_sr + params["sr_b"][None, :, None, None]
        x_kv = x_sr.reshape(B, C, -1).transpose(0, 2, 1)   # (B, Nk, C)
        g = params["norm_w"].reshape(1, C)
        beta = params["norm_b"].reshape(1, C)
        apply_ln = True
    else:
        x_kv = x
        g = jnp.ones((1, C), x.dtype)
        beta = jnp.zeros((1, C), x.dtype)
        apply_ln = False

    Nk = x_kv.shape[1]
    kernel = functools.partial(_attn_kernel, num_heads=num_heads,
                               scale=scale, apply_ln=apply_ln)

    flops = B * (2 * N * C * C                      # q projection
                 + 2 * Nk * C * (2 * C)             # kv projection
                 + num_heads * (2 * N * Nk * C      # masked q @ k^T
                                + 2 * N * Nk * C    # p @ v
                                + 2 * N * C * C))   # per-head proj accumulate
    bytes_accessed = 4 * (2 * B * N * C + B * Nk * C + 4 * C * C + 7 * C)
    cost = pl.CostEstimate(flops=flops,
                           transcendentals=B * num_heads * N * Nk,
                           bytes_accessed=bytes_accessed)

    out = pl.pallas_call(
        kernel,
        out_shape=jax.ShapeDtypeStruct((B, N, C), x.dtype),
        grid=(B,),
        in_specs=[
            pl.BlockSpec((None, N, C), lambda b: (b, 0, 0)),    # x (queries)
            pl.BlockSpec((None, Nk, C), lambda b: (b, 0, 0)),   # kv source
            pl.BlockSpec((C, C), lambda b: (0, 0)),             # Wq
            pl.BlockSpec((1, C), lambda b: (0, 0)),             # bq
            pl.BlockSpec((C, 2 * C), lambda b: (0, 0)),         # Wkv
            pl.BlockSpec((1, 2 * C), lambda b: (0, 0)),         # bkv
            pl.BlockSpec((1, C), lambda b: (0, 0)),             # LN gamma
            pl.BlockSpec((1, C), lambda b: (0, 0)),             # LN beta
            pl.BlockSpec((C, C), lambda b: (0, 0)),             # Wproj
            pl.BlockSpec((1, C), lambda b: (0, 0)),             # bproj
        ],
        out_specs=pl.BlockSpec((None, N, C), lambda b: (b, 0, 0)),
        compiler_params=pltpu.CompilerParams(dimension_semantics=("parallel",)),
        cost_estimate=cost,
    )(x, x_kv, wq, bq, wkv, bkv, g, beta, wo, bo)
    return out


def _reference(x, H, W, params, *, num_heads, sr_ratio=1, qk_scale=None):
    """Plain-JAX mirror of the PyTorch forward (for correctness check)."""
    B, N, C = x.shape
    dh = C // num_heads
    scale = qk_scale if qk_scale is not None else dh ** (-0.5)
    hp = jax.lax.Precision.HIGHEST

    def lin(a, w, b):
        return jnp.matmul(a, w.T, precision=hp) + b

    q = lin(x, params["q_w"], params["q_b"])
    q = q.reshape(B, N, num_heads, dh).transpose(0, 2, 1, 3)

    if sr_ratio > 1:
        x_ = x.transpose(0, 2, 1).reshape(B, C, H, W)
        x_ = jax.lax.conv_general_dilated(
            x_, params["sr_w"], (sr_ratio, sr_ratio), "VALID",
            dimension_numbers=("NCHW", "OIHW", "NCHW"))
        x_ = x_ + params["sr_b"][None, :, None, None]
        x_ = x_.reshape(B, C, -1).transpose(0, 2, 1)
        mu = x_.mean(-1, keepdims=True)
        var = ((x_ - mu) ** 2).mean(-1, keepdims=True)
        x_ = (x_ - mu) / jnp.sqrt(var + LN_EPS) * params["norm_w"] + params["norm_b"]
    else:
        x_ = x

    kv = lin(x_, params["kv_w"], params["kv_b"])
    Nk = kv.shape[1]
    kv = kv.reshape(B, Nk, 2, num_heads, dh).transpose(2, 0, 3, 1, 4)
    k, v = kv[0], kv[1]

    attn = jnp.einsum("bhqd,bhkd->bhqk", q, k, precision=hp) * scale
    attn = jax.nn.softmax(attn, axis=-1)
    out = jnp.einsum("bhqk,bhkd->bhqd", attn, v, precision=hp)
    out = out.transpose(0, 2, 1, 3).reshape(B, N, C)
    return lin(out, params["proj_w"], params["proj_b"])


if __name__ == "__main__":
    # Small shapes consistent with the module: dim=32, num_heads=4 (head_dim=8),
    # batch=2, H=W=8 -> N=64 tokens. Tested with sr_ratio=1 (default) and 2.
    B, C, H, W = 2, 32, 8, 8
    num_heads = 4
    N = H * W

    key = jax.random.PRNGKey(0)
    ks = jax.random.split(key, 5)
    x = jax.random.normal(ks[0], (B, N, C), dtype=jnp.float32)

    # _init_weights: Linear ~ trunc_normal(std=0.02) (plain normal here), bias=0;
    # Conv2d ~ normal(0, sqrt(2/fan_out)), bias=0; LayerNorm weight=1, bias=0.
    std = 0.02
    params = {
        "q_w": std * jax.random.normal(ks[1], (C, C), dtype=jnp.float32),
        "q_b": jnp.zeros((C,), jnp.float32),          # qkv_bias=False -> zero (no-op)
        "kv_w": std * jax.random.normal(ks[2], (2 * C, C), dtype=jnp.float32),
        "kv_b": jnp.zeros((2 * C,), jnp.float32),
        "proj_w": std * jax.random.normal(ks[3], (C, C), dtype=jnp.float32),
        "proj_b": jnp.zeros((C,), jnp.float32),
        # sr_ratio=2 branch (Conv2d k=2, s=2 + LayerNorm)
        "sr_w": math.sqrt(2.0 / (2 * 2 * C)) * jax.random.normal(
            ks[4], (C, C, 2, 2), dtype=jnp.float32),
        "sr_b": jnp.zeros((C,), jnp.float32),
        "norm_w": jnp.ones((C,), jnp.float32),
        "norm_b": jnp.zeros((C,), jnp.float32),
    }

    for sr in (1, 2):
        out = mit_attention(x, H, W, params, num_heads=num_heads, sr_ratio=sr)
        out = jax.block_until_ready(out)
        ref = _reference(x, H, W, params, num_heads=num_heads, sr_ratio=sr)
        assert out.shape == (B, N, C)
        assert jnp.allclose(out, ref, atol=1e-4, rtol=1e-3), f"mismatch at sr_ratio={sr}"

    print("KERNEL_OK")
</pallas_src>

<mosaic_0001>
module attributes {stable_mosaic.version = 11 : i64} {
  func.func @_attn_kernel(%arg0: i32, %arg1: memref<1x64x32xf32, #tpu.memory_space<vmem>>, %arg2: memref<1x64x32xf32, #tpu.memory_space<vmem>>, %arg3: memref<32x32xf32, #tpu.memory_space<vmem>>, %arg4: memref<1x32xf32, #tpu.memory_space<vmem>>, %arg5: memref<32x64xf32, #tpu.memory_space<vmem>>, %arg6: memref<1x64xf32, #tpu.memory_space<vmem>>, %arg7: memref<1x32xf32, #tpu.memory_space<vmem>>, %arg8: memref<1x32xf32, #tpu.memory_space<vmem>>, %arg9: memref<32x32xf32, #tpu.memory_space<vmem>>, %arg10: memref<1x32xf32, #tpu.memory_space<vmem>>, %arg11: memref<1x64x32xf32, #tpu.memory_space<vmem>>) attributes {dimension_semantics = [#tpu.dimension_semantics<parallel>], iteration_bounds = array<i64: 2>, scalar_prefetch = 0 : i64, scratch_operands = 0 : i64, tpu.core_type = #tpu.core_type<tc>, window_params = [{transform_indices = @transform_0, window_bounds = array<i64: 1, 64, 32>}, {transform_indices = @transform_1, window_bounds = array<i64: 1, 64, 32>}, {pipeline_mode = #tpu.pipeline_mode<synchronous>, transform_indices = @transform_2, window_bounds = array<i64: 32, 32>}, {pipeline_mode = #tpu.pipeline_mode<synchronous>, transform_indices = @transform_3, window_bounds = array<i64: 1, 32>}, {pipeline_mode = #tpu.pipeline_mode<synchronous>, transform_indices = @transform_4, window_bounds = array<i64: 32, 64>}, {pipeline_mode = #tpu.pipeline_mode<synchronous>, transform_indices = @transform_5, window_bounds = array<i64: 1, 64>}, {pipeline_mode = #tpu.pipeline_mode<synchronous>, transform_indices = @transform_6, window_bounds = array<i64: 1, 32>}, {pipeline_mode = #tpu.pipeline_mode<synchronous>, transform_indices = @transform_7, window_bounds = array<i64: 1, 32>}, {pipeline_mode = #tpu.pipeline_mode<synchronous>, transform_indices = @transform_8, window_bounds = array<i64: 32, 32>}, {pipeline_mode = #tpu.pipeline_mode<synchronous>, transform_indices = @transform_9, window_bounds = array<i64: 1, 32>}, {transform_indices = @transform_10, window_bounds = array<i64: 1, 64, 32>}]} {
    %c0 = arith.constant 0 : index
    %c0_0 = arith.constant 0 : index
    %c0_1 = arith.constant 0 : index
    %0 = vector.load %arg1[%c0, %c0_0, %c0_1] : memref<1x64x32xf32, #tpu.memory_space<vmem>>, vector<1x64x32xf32>
    %1 = vector.shape_cast %0 : vector<1x64x32xf32> to vector<64x32xf32>
    %c0_2 = arith.constant 0 : index
    %c0_3 = arith.constant 0 : index
    %c0_4 = arith.constant 0 : index
    %2 = vector.load %arg2[%c0_2, %c0_3, %c0_4] : memref<1x64x32xf32, #tpu.memory_space<vmem>>, vector<1x64x32xf32>
    %3 = vector.shape_cast %2 : vector<1x64x32xf32> to vector<64x32xf32>
    %c0_5 = arith.constant 0 : index
    %c0_6 = arith.constant 0 : index
    %4 = vector.load %arg3[%c0_5, %c0_6] : memref<32x32xf32, #tpu.memory_space<vmem>>, vector<32x32xf32>
    %cst = arith.constant dense<0.000000e+00> : vector<64x32xf32>
    %5 = tpu.matmul %1, %4, %cst {dimension_numbers = #tpu.dot_dimension_numbers<[1], [0], [0], [1], [0, 0, 1, 1], [], []>} : vector<64x32xf32>, vector<32x32xf32>, vector<64x32xf32> -> vector<64x32xf32>
    %c0_7 = arith.constant 0 : index
    %c0_8 = arith.constant 0 : index
    %6 = vector.load %arg4[%c0_7, %c0_8] : memref<1x32xf32, #tpu.memory_space<vmem>>, vector<1x32xf32>
    %7 = vector.broadcast %6 : vector<1x32xf32> to vector<64x32xf32>
    %8 = arith.addf %5, %7 : vector<64x32xf32>
    %c0_9 = arith.constant 0 : index
    %c0_10 = arith.constant 0 : index
    %9 = vector.load %arg5[%c0_9, %c0_10] : memref<32x64xf32, #tpu.memory_space<vmem>>, vector<32x64xf32>
    %cst_11 = arith.constant dense<0.000000e+00> : vector<64x64xf32>
    %10 = tpu.matmul %3, %9, %cst_11 {dimension_numbers = #tpu.dot_dimension_numbers<[1], [0], [0], [1], [0, 0, 1, 1], [], []>} : vector<64x32xf32>, vector<32x64xf32>, vector<64x64xf32> -> vector<64x64xf32>
    %c0_12 = arith.constant 0 : index
    %c0_13 = arith.constant 0 : index
    %11 = vector.load %arg6[%c0_12, %c0_13] : memref<1x64xf32, #tpu.memory_space<vmem>>, vector<1x64xf32>
    %12 = vector.broadcast %11 : vector<1x64xf32> to vector<64x64xf32>
    %13 = arith.addf %10, %12 : vector<64x64xf32>
    %14 = vector.extract_strided_slice %13 {offsets = [0, 0], sizes = [64, 32], strides = [1, 1]} : vector<64x64xf32> to vector<64x32xf32>
    %15 = vector.extract_strided_slice %13 {offsets = [0, 32], sizes = [64, 32], strides = [1, 1]} : vector<64x64xf32> to vector<64x32xf32>
    %c0_14 = arith.constant 0 : index
    %c0_15 = arith.constant 0 : index
    %16 = vector.load %arg9[%c0_14, %c0_15] : memref<32x32xf32, #tpu.memory_space<vmem>>, vector<32x32xf32>
    %17 = tpu.iota {dimensions = array<i32: 1>} : vector<1x32xi32>
    %cst_16 = arith.constant 0.000000e+00 : f32
    %18 = vector.broadcast %cst_16 : f32 to vector<64x32xf32>
    %c0_i32 = arith.constant 0 : i32
    %19 = vector.broadcast %c0_i32 : i32 to vector<1x32xi32>
    %20 = arith.cmpi sge, %17, %19 : vector<1x32xi32>
    %c8_i32 = arith.constant 8 : i32
    %21 = vector.broadcast %c8_i32 : i32 to vector<1x32xi32>
    %22 = arith.cmpi slt, %17, %21 : vector<1x32xi32>
    %23 = arith.andi %20, %22 : vector<1x32xi1>
    %cst_17 = arith.constant 1.000000e+00 : f32
    %cst_18 = arith.constant 0.000000e+00 : f32
    %24 = vector.broadcast %cst_17 : f32 to vector<1x32xf32>
    %25 = vector.broadcast %cst_18 : f32 to vector<1x32xf32>
    %26 = arith.select %23, %24, %25 : vector<1x32xi1>, vector<1x32xf32>
    %27 = vector.broadcast %26 : vector<1x32xf32> to vector<64x32xf32>
    %28 = arith.mulf %8, %27 : vector<64x32xf32>
    %cst_19 = arith.constant dense<0.000000e+00> : vector<64x64xf32>
    %29 = tpu.matmul %28, %14, %cst_19 {dimension_numbers = #tpu.dot_dimension_numbers<[1], [1], [0], [0], [0, 0, 1, 0], [], []>} : vector<64x32xf32>, vector<64x32xf32>, vector<64x64xf32> -> vector<64x64xf32>
    %cst_20 = arith.constant 0.353553385 : f32
    %30 = vector.broadcast %cst_20 : f32 to vector<64x64xf32>
    %31 = arith.mulf %29, %30 : vector<64x64xf32>
    %cst_21 = arith.constant dense<0xFF800000> : vector<64xf32>
    %32 = vector.multi_reduction <maximumf>, %31, %cst_21 [1] : vector<64x64xf32> to vector<64xf32>
    %33 = vector.shape_cast %32 : vector<64xf32> to vector<64x1xf32>
    %34 = vector.broadcast %33 : vector<64x1xf32> to vector<64x64xf32>
    %35 = arith.subf %31, %34 : vector<64x64xf32>
    %36 = math.exp %35 : vector<64x64xf32>
    %cst_22 = arith.constant dense<0.000000e+00> : vector<64xf32>
    %37 = vector.multi_reduction <add>, %36, %cst_22 [1] : vector<64x64xf32> to vector<64xf32>
    %38 = vector.shape_cast %37 : vector<64xf32> to vector<64x1xf32>
    %39 = vector.broadcast %38 : vector<64x1xf32> to vector<64x64xf32>
    %40 = arith.divf %36, %39 : vector<64x64xf32>
    %41 = vector.broadcast %26 : vector<1x32xf32> to vector<64x32xf32>
    %42 = arith.mulf %15, %41 : vector<64x32xf32>
    %cst_23 = arith.constant dense<0.000000e+00> : vector<64x32xf32>
    %43 = tpu.matmul %40, %42, %cst_23 {dimension_numbers = #tpu.dot_dimension_numbers<[1], [0], [0], [1], [0, 0, 1, 1], [], []>} : vector<64x64xf32>, vector<64x32xf32>, vector<64x32xf32> -> vector<64x32xf32>
    %cst_24 = arith.constant dense<0.000000e+00> : vector<64x32xf32>
    %44 = tpu.matmul %43, %16, %cst_24 {dimension_numbers = #tpu.dot_dimension_numbers<[1], [0], [0], [1], [0, 0, 1, 1], [], []>} : vector<64x32xf32>, vector<32x32xf32>, vector<64x32xf32> -> vector<64x32xf32>
    %45 = arith.addf %18, %44 : vector<64x32xf32>
    %c8_i32_25 = arith.constant 8 : i32
    %46 = vector.broadcast %c8_i32_25 : i32 to vector<1x32xi32>
    %47 = arith.cmpi sge, %17, %46 : vector<1x32xi32>
    %c16_i32 = arith.constant 16 : i32
    %48 = vector.broadcast %c16_i32 : i32 to vector<1x32xi32>
    %49 = arith.cmpi slt, %17, %48 : vector<1x32xi32>
    %50 = arith.andi %47, %49 : vector<1x32xi1>
    %cst_26 = arith.constant 1.000000e+00 : f32
    %cst_27 = arith.constant 0.000000e+00 : f32
    %51 = vector.broadcast %cst_26 : f32 to vector<1x32xf32>
    %52 = vector.broadcast %cst_27 : f32 to vector<1x32xf32>
    %53 = arith.select %50, %51, %52 : vector<1x32xi1>, vector<1x32xf32>
    %54 = vector.broadcast %53 : vector<1x32xf32> to vector<64x32xf32>
    %55 = arith.mulf %8, %54 : vector<64x32xf32>
    %cst_28 = arith.constant dense<0.000000e+00> : vector<64x64xf32>
    %56 = tpu.matmul %55, %14, %cst_28 {dimension_numbers = #tpu.dot_dimension_numbers<[1], [1], [0], [0], [0, 0, 1, 0], [], []>} : vector<64x32xf32>, vector<64x32xf32>, vector<64x64xf32> -> vector<64x64xf32>
    %cst_29 = arith.constant 0.353553385 : f32
    %57 = vector.broadcast %cst_29 : f32 to vector<64x64xf32>
    %58 = arith.mulf %56, %57 : vector<64x64xf32>
    %cst_30 = arith.constant dense<0xFF800000> : vector<64xf32>
    %59 = vector.multi_reduction <maximumf>, %58, %cst_30 [1] : vector<64x64xf32> to vector<64xf32>
    %60 = vector.shape_cast %59 : vector<64xf32> to vector<64x1xf32>
    %61 = vector.broadcast %60 : vector<64x1xf32> to vector<64x64xf32>
    %62 = arith.subf %58, %61 : vector<64x64xf32>
    %63 = math.exp %62 : vector<64x64xf32>
    %cst_31 = arith.constant dense<0.000000e+00> : vector<64xf32>
    %64 = vector.multi_reduction <add>, %63, %cst_31 [1] : vector<64x64xf32> to vector<64xf32>
    %65 = vector.shape_cast %64 : vector<64xf32> to vector<64x1xf32>
    %66 = vector.broadcast %65 : vector<64x1xf32> to vector<64x64xf32>
    %67 = arith.divf %63, %66 : vector<64x64xf32>
    %68 = vector.broadcast %53 : vector<1x32xf32> to vector<64x32xf32>
    %69 = arith.mulf %15, %68 : vector<64x32xf32>
    %cst_32 = arith.constant dense<0.000000e+00> : vector<64x32xf32>
    %70 = tpu.matmul %67, %69, %cst_32 {dimension_numbers = #tpu.dot_dimension_numbers<[1], [0], [0], [1], [0, 0, 1, 1], [], []>} : vector<64x64xf32>, vector<64x32xf32>, vector<64x32xf32> -> vector<64x32xf32>
    %cst_33 = arith.constant dense<0.000000e+00> : vector<64x32xf32>
    %71 = tpu.matmul %70, %16, %cst_33 {dimension_numbers = #tpu.dot_dimension_numbers<[1], [0], [0], [1], [0, 0, 1, 1], [], []>} : vector<64x32xf32>, vector<32x32xf32>, vector<64x32xf32> -> vector<64x32xf32>
    %72 = arith.addf %45, %71 : vector<64x32xf32>
    %c16_i32_34 = arith.constant 16 : i32
    %73 = vector.broadcast %c16_i32_34 : i32 to vector<1x32xi32>
    %74 = arith.cmpi sge, %17, %73 : vector<1x32xi32>
    %c24_i32 = arith.constant 24 : i32
    %75 = vector.broadcast %c24_i32 : i32 to vector<1x32xi32>
    %76 = arith.cmpi slt, %17, %75 : vector<1x32xi32>
    %77 = arith.andi %74, %76 : vector<1x32xi1>
    %cst_35 = arith.constant 1.000000e+00 : f32
    %cst_36 = arith.constant 0.000000e+00 : f32
    %78 = vector.broadcast %cst_35 : f32 to vector<1x32xf32>
    %79 = vector.broadcast %cst_36 : f32 to vector<1x32xf32>
    %80 = arith.select %77, %78, %79 : vector<1x32xi1>, vector<1x32xf32>
    %81 = vector.broadcast %80 : vector<1x32xf32> to vector<64x32xf32>
    %82 = arith.mulf %8, %81 : vector<64x32xf32>
    %cst_37 = arith.constant dense<0.000000e+00> : vector<64x64xf32>
    %83 = tpu.matmul %82, %14, %cst_37 {dimension_numbers = #tpu.dot_dimension_numbers<[1], [1], [0], [0], [0, 0, 1, 0], [], []>} : vector<64x32xf32>, vector<64x32xf32>, vector<64x64xf32> -> vector<64x64xf32>
    %cst_38 = arith.constant 0.353553385 : f32
    %84 = vector.broadcast %cst_38 : f32 to vector<64x64xf32>
    %85 = arith.mulf %83, %84 : vector<64x64xf32>
    %cst_39 = arith.constant dense<0xFF800000> : vector<64xf32>
    %86 = vector.multi_reduction <maximumf>, %85, %cst_39 [1] : vector<64x64xf32> to vector<64xf32>
    %87 = vector.shape_cast %86 : vector<64xf32> to vector<64x1xf32>
    %88 = vector.broadcast %87 : vector<64x1xf32> to vector<64x64xf32>
    %89 = arith.subf %85, %88 : vector<64x64xf32>
    %90 = math.exp %89 : vector<64x64xf32>
    %cst_40 = arith.constant dense<0.000000e+00> : vector<64xf32>
    %91 = vector.multi_reduction <add>, %90, %cst_40 [1] : vector<64x64xf32> to vector<64xf32>
    %92 = vector.shape_cast %91 : vector<64xf32> to vector<64x1xf32>
    %93 = vector.broadcast %92 : vector<64x1xf32> to vector<64x64xf32>
    %94 = arith.divf %90, %93 : vector<64x64xf32>
    %95 = vector.broadcast %80 : vector<1x32xf32> to vector<64x32xf32>
    %96 = arith.mulf %15, %95 : vector<64x32xf32>
    %cst_41 = arith.constant dense<0.000000e+00> : vector<64x32xf32>
    %97 = tpu.matmul %94, %96, %cst_41 {dimension_numbers = #tpu.dot_dimension_numbers<[1], [0], [0], [1], [0, 0, 1, 1], [], []>} : vector<64x64xf32>, vector<64x32xf32>, vector<64x32xf32> -> vector<64x32xf32>
    %cst_42 = arith.constant dense<0.000000e+00> : vector<64x32xf32>
    %98 = tpu.matmul %97, %16, %cst_42 {dimension_numbers = #tpu.dot_dimension_numbers<[1], [0], [0], [1], [0, 0, 1, 1], [], []>} : vector<64x32xf32>, vector<32x32xf32>, vector<64x32xf32> -> vector<64x32xf32>
    %99 = arith.addf %72, %98 : vector<64x32xf32>
    %c24_i32_43 = arith.constant 24 : i32
    %100 = vector.broadcast %c24_i32_43 : i32 to vector<1x32xi32>
    %101 = arith.cmpi sge, %17, %100 : vector<1x32xi32>
    %c32_i32 = arith.constant 32 : i32
    %102 = vector.broadcast %c32_i32 : i32 to vector<1x32xi32>
    %103 = arith.cmpi slt, %17, %102 : vector<1x32xi32>
    %104 = arith.andi %101, %103 : vector<1x32xi1>
    %cst_44 = arith.constant 1.000000e+00 : f32
    %cst_45 = arith.constant 0.000000e+00 : f32
    %105 = vector.broadcast %cst_44 : f32 to vector<1x32xf32>
    %106 = vector.broadcast %cst_45 : f32 to vector<1x32xf32>
    %107 = arith.select %104, %105, %106 : vector<1x32xi1>, vector<1x32xf32>
    %108 = vector.broadcast %107 : vector<1x32xf32> to vector<64x32xf32>
    %109 = arith.mulf %8, %108 : vector<64x32xf32>
    %cst_46 = arith.constant dense<0.000000e+00> : vector<64x64xf32>
    %110 = tpu.matmul %109, %14, %cst_46 {dimension_numbers = #tpu.dot_dimension_numbers<[1], [1], [0], [0], [0, 0, 1, 0], [], []>} : vector<64x32xf32>, vector<64x32xf32>, vector<64x64xf32> -> vector<64x64xf32>
    %cst_47 = arith.constant 0.353553385 : f32
    %111 = vector.broadcast %cst_47 : f32 to vector<64x64xf32>
    %112 = arith.mulf %110, %111 : vector<64x64xf32>
    %cst_48 = arith.constant dense<0xFF800000> : vector<64xf32>
    %113 = vector.multi_reduction <maximumf>, %112, %cst_48 [1] : vector<64x64xf32> to vector<64xf32>
    %114 = vector.shape_cast %113 : vector<64xf32> to vector<64x1xf32>
    %115 = vector.broadcast %114 : vector<64x1xf32> to vector<64x64xf32>
    %116 = arith.subf %112, %115 : vector<64x64xf32>
    %117 = math.exp %116 : vector<64x64xf32>
    %cst_49 = arith.constant dense<0.000000e+00> : vector<64xf32>
    %118 = vector.multi_reduction <add>, %117, %cst_49 [1] : vector<64x64xf32> to vector<64xf32>
    %119 = vector.shape_cast %118 : vector<64xf32> to vector<64x1xf32>
    %120 = vector.broadcast %119 : vector<64x1xf32> to vector<64x64xf32>
    %121 = arith.divf %117, %120 : vector<64x64xf32>
    %122 = vector.broadcast %107 : vector<1x32xf32> to vector<64x32xf32>
    %123 = arith.mulf %15, %122 : vector<64x32xf32>
    %cst_50 = arith.constant dense<0.000000e+00> : vector<64x32xf32>
    %124 = tpu.matmul %121, %123, %cst_50 {dimension_numbers = #tpu.dot_dimension_numbers<[1], [0], [0], [1], [0, 0, 1, 1], [], []>} : vector<64x64xf32>, vector<64x32xf32>, vector<64x32xf32> -> vector<64x32xf32>
    %cst_51 = arith.constant dense<0.000000e+00> : vector<64x32xf32>
    %125 = tpu.matmul %124, %16, %cst_51 {dimension_numbers = #tpu.dot_dimension_numbers<[1], [0], [0], [1], [0, 0, 1, 1], [], []>} : vector<64x32xf32>, vector<32x32xf32>, vector<64x32xf32> -> vector<64x32xf32>
    %126 = arith.addf %99, %125 : vector<64x32xf32>
    %c0_52 = arith.constant 0 : index
    %c0_53 = arith.constant 0 : index
    %127 = vector.load %arg10[%c0_52, %c0_53] : memref<1x32xf32, #tpu.memory_space<vmem>>, vector<1x32xf32>
    %128 = vector.broadcast %127 : vector<1x32xf32> to vector<64x32xf32>
    %129 = arith.addf %126, %128 : vector<64x32xf32>
    %c0_54 = arith.constant 0 : index
    %c0_55 = arith.constant 0 : index
    %c0_56 = arith.constant 0 : index
    %130 = vector.load %arg11[%c0_54, %c0_55, %c0_56] : memref<1x64x32xf32, #tpu.memory_space<vmem>>, vector<1x64x32xf32>
    %131 = vector.shape_cast %130 : vector<1x64x32xf32> to vector<64x32xf32>
    %132 = vector.shape_cast %129 : vector<64x32xf32> to vector<1x64x32xf32>
    tpu.vector_store %arg11[%c0_54, %c0_55, %c0_56], %132 {strides = array<i32>} : memref<1x64x32xf32, #tpu.memory_space<vmem>>, vector<1x64x32xf32>,
    return
  }
  func.func @transform_0(%arg0: i32) -> (i32, i32, i32) {
    %c0_i32 = arith.constant 0 : i32
    %c0_i32_0 = arith.constant 0 : i32
    %c0_i32_1 = arith.constant 0 : i32
    return %arg0, %c0_i32, %c0_i32_0 : i32, i32, i32
  }
  func.func @transform_1(%arg0: i32) -> (i32, i32, i32) {
    %c0_i32 = arith.constant 0 : i32
    %c0_i32_0 = arith.constant 0 : i32
    %c0_i32_1 = arith.constant 0 : i32
    return %arg0, %c0_i32, %c0_i32_0 : i32, i32, i32
  }
  func.func @transform_2(%arg0: i32) -> (i32, i32) {
    %c0_i32 = arith.constant 0 : i32
    %c0_i32_0 = arith.constant 0 : i32
    %c0_i32_1 = arith.constant 0 : i32
    return %c0_i32, %c0_i32_0 : i32, i32
  }
  func.func @transform_3(%arg0: i32) -> (i32, i32) {
    %c0_i32 = arith.constant 0 : i32
    %c0_i32_0 = arith.constant 0 : i32
    %c0_i32_1 = arith.constant 0 : i32
    return %c0_i32, %c0_i32_0 : i32, i32
  }
  func.func @transform_4(%arg0: i32) -> (i32, i32) {
    %c0_i32 = arith.constant 0 : i32
    %c0_i32_0 = arith.constant 0 : i32
    %c0_i32_1 = arith.constant 0 : i32
    return %c0_i32, %c0_i32_0 : i32, i32
  }
  func.func @transform_5(%arg0: i32) -> (i32, i32) {
    %c0_i32 = arith.constant 0 : i32
    %c0_i32_0 = arith.constant 0 : i32
    %c0_i32_1 = arith.constant 0 : i32
    return %c0_i32, %c0_i32_0 : i32, i32
  }
  func.func @transform_6(%arg0: i32) -> (i32, i32) {
    %c0_i32 = arith.constant 0 : i32
    %c0_i32_0 = arith.constant 0 : i32
    %c0_i32_1 = arith.constant 0 : i32
    return %c0_i32, %c0_i32_0 : i32, i32
  }
  func.func @transform_7(%arg0: i32) -> (i32, i32) {
    %c0_i32 = arith.constant 0 : i32
    %c0_i32_0 = arith.constant 0 : i32
    %c0_i32_1 = arith.constant 0 : i32
    return %c0_i32, %c0_i32_0 : i32, i32
  }
  func.func @transform_8(%arg0: i32) -> (i32, i32) {
    %c0_i32 = arith.constant 0 : i32
    %c0_i32_0 = arith.constant 0 : i32
    %c0_i32_1 = arith.constant 0 : i32
    return %c0_i32, %c0_i32_0 : i32, i32
  }
  func.func @transform_9(%arg0: i32) -> (i32, i32) {
    %c0_i32 = arith.constant 0 : i32
    %c0_i32_0 = arith.constant 0 : i32
    %c0_i32_1 = arith.constant 0 : i32
    return %c0_i32, %c0_i32_0 : i32, i32
  }
  func.func @transform_10(%arg0: i32) -> (i32, i32, i32) {
    %c0_i32 = arith.constant 0 : i32
    %c0_i32_0 = arith.constant 0 : i32
    %c0_i32_1 = arith.constant 0 : i32
    return %arg0, %c0_i32, %c0_i32_0 : i32, i32, i32
  }
}

</mosaic_0001>

<llo_original>
// kernel: tpu_custom_call.1
$region0: #{tpu_custom_call.1}
  #allocation0 [shape = 'u32[]', space=smem, size = 0x4, offset = 0x4, fixed_abs, tag = 'smem constant byte address 0x4 - core index']
  #allocation1 [shape = 'u32[144,128]{1,0:T(1,128)}', space=vmem, size = 0x12000, scoped, tag = 'internal scratch']
  %s0 = inlined_call_operand.vmem [shape: f32[2,64,32], index: 0, kind: input, shape index: {}]
  %s1 = inlined_call_operand.vmem [shape: f32[2,64,32], index: 1, kind: input, shape index: {}]
  %s2 = inlined_call_operand.vmem [shape: f32[32,32], index: 2, kind: input, shape index: {}]
  %s3 = inlined_call_operand.vmem [shape: f32[1,32], index: 3, kind: input, shape index: {}]
  %s4 = inlined_call_operand.vmem [shape: f32[32,64], index: 4, kind: input, shape index: {}]
  %s5 = inlined_call_operand.vmem [shape: f32[1,64], index: 5, kind: input, shape index: {}]
  %s6 = inlined_call_operand.vmem [shape: f32[1,32], index: 6, kind: input, shape index: {}]
  %s7 = inlined_call_operand.vmem [shape: f32[1,32], index: 7, kind: input, shape index: {}]
  %s8 = inlined_call_operand.vmem [shape: f32[32,32], index: 8, kind: input, shape index: {}]
  %s9 = inlined_call_operand.vmem [shape: f32[1,32], index: 9, kind: input, shape index: {}]
  %s10 = inlined_call_operand.vmem [shape: f32[2,64,32], index: 10, kind: output, shape index: {}]
  %s11 = sld [smem:[#allocation0]]
  $region73: #{tpu_custom_call.1} parent=0
    _
  %s13 = ssub.s32 1, %s11
  %s14 = scalar_select 0, %s13, %s11
  loop: start=0, step=1, limit=4
  $region2: #{tpu_custom_call.1} parent=0 // loop_pre_header
    _
  $region3: #{tpu_custom_call.1} parent=0 // loop_header
    %s16 = sphi 0, %s20
    %p17 = scmp.ge.s32.totalorder %s16, 4
    %s26 = sphi 0, %s28
    %s29 = sphi 0, %s26
    %s30 = sphi 0, %s29
    %s46 = sphi 0, %s30
    %s52 = sphi 0, %s54
    %s55 = sphi 0, %s52
    %s56 = sphi 0, %s55
    %s72 = sphi 0, %s56
    %s76 = sphi 0, %s76
    %s78 = sphi 0, %s76
    %s79 = sphi 0, %s78
    %s93 = sphi 0, %s79
    %s97 = sphi 0, %s97
    %s99 = sphi 0, %s97
    %s100 = sphi 0, %s99
    %s114 = sphi 0, %s100
    %s118 = sphi 0, %s118
    %s120 = sphi 0, %s118
    %s121 = sphi 0, %s120
    %s135 = sphi 0, %s121
    %s139 = sphi 0, %s139
    %s141 = sphi 0, %s139
    %s142 = sphi 0, %s141
    %s156 = sphi 0, %s142
    %s160 = sphi 0, %s160
    %s162 = sphi 0, %s160
    %s163 = sphi 0, %s162
    %s177 = sphi 0, %s163
    %s181 = sphi 0, %s181
    %s183 = sphi 0, %s181
    %s184 = sphi 0, %s183
    %s198 = sphi 0, %s184
    %s202 = sphi 0, %s202
    %s204 = sphi 0, %s202
    %s205 = sphi 0, %s204
    %s219 = sphi 0, %s205
    %s223 = sphi 0, %s223
    %s225 = sphi 0, %s223
    %s226 = sphi 0, %s225
    %s240 = sphi 0, %s226
    %s246 = sphi 0, %s248
    %s249 = sphi 0, %s246
    %s250 = sphi 0, %s249
    %s266 = sphi 0, %s250
  $region4: #{tpu_custom_call.1} parent=0 // loop_header_branch
    %19 = sbr.rel (%p17) target = $region8
  $region5: #{tpu_custom_call.1} parent=0 // loop_body
    %s21 = ssub.s32 %s16, 1
    %s22 = ssub.s32 %s16, 2
    %s23 = sadd.s32 %s16, 1
    %s24 = ssub.s32 %s16, %s23
    %p25 = scmp.eq.s32.totalorder %s24, 0
    %s27 = sadd.s32 %s26, 1
    %s28 = scalar_select %p25, %s26, %s27
    %p31 = pneg %p25
    %p32 = scmp.eq.s32.totalorder %s16, 1
    %p33 = por %p31, %p32
    %p34 = scmp.ne.s32.totalorder %s26, %s29
    %p35 = scmp.eq.s32.totalorder %s16, 0
    %p36 = por %p34, %p35
    %p37 = scmp.ne.s32.totalorder %s26, %s29
    %p38 = scmp.eq.s32.totalorder %s21, 1
    %p39 = por %p37, %p38
    %p40 = scmp.ne.s32.totalorder %s29, %s30
    %p41 = scmp.eq.s32.totalorder %s21, 0
    %p42 = por %p40, %p41
    %p43 = scmp.ne.s32.totalorder %s29, %s30
    %p44 = scmp.eq.s32.totalorder %s22, 1
    %p45 = por %p43, %p44
    %p47 = scmp.ne.s32.totalorder %s30, %s46
    %p48 = scmp.eq.s32.totalorder %s22, 0
    %p49 = por %p47, %p48
    %s50 = ssub.s32 %s16, %s23
    %p51 = scmp.eq.s32.totalorder %s50, 0
    %s53 = sadd.s32 %s52, 1
    %s54 = scalar_select %p51, %s52, %s53
    %p57 = pneg %p51
    %p58 = scmp.eq.s32.totalorder %s16, 1
    %p59 = por %p57, %p58
    %p60 = scmp.ne.s32.totalorder %s52, %s55
    %p61 = scmp.eq.s32.totalorder %s16, 0
    %p62 = por %p60, %p61
    %p63 = scmp.ne.s32.totalorder %s52, %s55
    %p64 = scmp.eq.s32.totalorder %s21, 1
    %p65 = por %p63, %p64
    %p66 = scmp.ne.s32.totalorder %s55, %s56
    %p67 = scmp.eq.s32.totalorder %s21, 0
    %p68 = por %p66, %p67
    %p69 = scmp.ne.s32.totalorder %s55, %s56
    %p70 = scmp.eq.s32.totalorder %s22, 1
    %p71 = por %p69, %p70
    %p73 = scmp.ne.s32.totalorder %s56, %s72
    %p74 = scmp.eq.s32.totalorder %s22, 0
    %p75 = por %p73, %p74
    %s77 = sadd.s32 %s76, 1
    %p80 = scmp.eq.s32.totalorder %s16, 1
    %p81 = scmp.ne.s32.totalorder %s76, %s78
    %p82 = scmp.eq.s32.totalorder %s16, 0
    %p83 = por %p81, %p82
    %p84 = scmp.ne.s32.totalorder %s76, %s78
    %p85 = scmp.eq.s32.totalorder %s21, 1
    %p86 = por %p84, %p85
    %p87 = scmp.ne.s32.totalorder %s78, %s79
    %p88 = scmp.eq.s32.totalorder %s21, 0
    %p89 = por %p87, %p88
    %p90 = scmp.ne.s32.totalorder %s78, %s79
    %p91 = scmp.eq.s32.totalorder %s22, 1
    %p92 = por %p90, %p91
    %p94 = scmp.ne.s32.totalorder %s79, %s93
    %p95 = scmp.eq.s32.totalorder %s22, 0
    %p96 = por %p94, %p95
    %s98 = sadd.s32 %s97, 1
    %p101 = scmp.eq.s32.totalorder %s16, 1
    %p102 = scmp.ne.s32.totalorder %s97, %s99
    %p103 = scmp.eq.s32.totalorder %s16, 0
    %p104 = por %p102, %p103
    %p105 = scmp.ne.s32.totalorder %s97, %s99
    %p106 = scmp.eq.s32.totalorder %s21, 1
    %p107 = por %p105, %p106
    %p108 = scmp.ne.s32.totalorder %s99, %s100
    %p109 = scmp.eq.s32.totalorder %s21, 0
    %p110 = por %p108, %p109
    %p111 = scmp.ne.s32.totalorder %s99, %s100
    %p112 = scmp.eq.s32.totalorder %s22, 1
    %p113 = por %p111, %p112
    %p115 = scmp.ne.s32.totalorder %s100, %s114
    %p116 = scmp.eq.s32.totalorder %s22, 0
    %p117 = por %p115, %p116
    %s119 = sadd.s32 %s118, 1
    %p122 = scmp.eq.s32.totalorder %s16, 1
    %p123 = scmp.ne.s32.totalorder %s118, %s120
    %p124 = scmp.eq.s32.totalorder %s16, 0
    %p125 = por %p123, %p124
    %p126 = scmp.ne.s32.totalorder %s118, %s120
    %p127 = scmp.eq.s32.totalorder %s21, 1
    %p128 = por %p126, %p127
    %p129 = scmp.ne.s32.totalorder %s120, %s121
    %p130 = scmp.eq.s32.totalorder %s21, 0
    %p131 = por %p129, %p130
    %p132 = scmp.ne.s32.totalorder %s120, %s121
    %p133 = scmp.eq.s32.totalorder %s22, 1
    %p134 = por %p132, %p133
    %p136 = scmp.ne.s32.totalorder %s121, %s135
    %p137 = scmp.eq.s32.totalorder %s22, 0
    %p138 = por %p136, %p137
    %s140 = sadd.s32 %s139, 1
    %p143 = scmp.eq.s32.totalorder %s16, 1
    %p144 = scmp.ne.s32.totalorder %s139, %s141
    %p145 = scmp.eq.s32.totalorder %s16, 0
    %p146 = por %p144, %p145
    %p147 = scmp.ne.s32.totalorder %s139, %s141
    %p148 = scmp.eq.s32.totalorder %s21, 1
    %p149 = por %p147, %p148
    %p150 = scmp.ne.s32.totalorder %s141, %s142
    %p151 = scmp.eq.s32.totalorder %s21, 0
    %p152 = por %p150, %p151
    %p153 = scmp.ne.s32.totalorder %s141, %s142
    %p154 = scmp.eq.s32.totalorder %s22, 1
    %p155 = por %p153, %p154
    %p157 = scmp.ne.s32.totalorder %s142, %s156
    %p158 = scmp.eq.s32.totalorder %s22, 0
    %p159 = por %p157, %p158
    %s161 = sadd.s32 %s160, 1
    %p164 = scmp.eq.s32.totalorder %s16, 1
    %p165 = scmp.ne.s32.totalorder %s160, %s162
    %p166 = scmp.eq.s32.totalorder %s16, 0
    %p167 = por %p165, %p166
    %p168 = scmp.ne.s32.totalorder %s160, %s162
    %p169 = scmp.eq.s32.totalorder %s21, 1
    %p170 = por %p168, %p169
    %p171 = scmp.ne.s32.totalorder %s162, %s163
    %p172 = scmp.eq.s32.totalorder %s21, 0
    %p173 = por %p171, %p172
    %p174 = scmp.ne.s32.totalorder %s162, %s163
    %p175 = scmp.eq.s32.totalorder %s22, 1
    %p176 = por %p174, %p175
    %p178 = scmp.ne.s32.totalorder %s163, %s177
    %p179 = scmp.eq.s32.totalorder %s22, 0
    %p180 = por %p178, %p179
    %s182 = sadd.s32 %s181, 1
    %p185 = scmp.eq.s32.totalorder %s16, 1
    %p186 = scmp.ne.s32.totalorder %s181, %s183
    %p187 = scmp.eq.s32.totalorder %s16, 0
    %p188 = por %p186, %p187
    %p189 = scmp.ne.s32.totalorder %s181, %s183
    %p190 = scmp.eq.s32.totalorder %s21, 1
    %p191 = por %p189, %p190
    %p192 = scmp.ne.s32.totalorder %s183, %s184
    %p193 = scmp.eq.s32.totalorder %s21, 0
    %p194 = por %p192, %p193
    %p195 = scmp.ne.s32.totalorder %s183, %s184
    %p196 = scmp.eq.s32.totalorder %s22, 1
    %p197 = por %p195, %p196
    %p199 = scmp.ne.s32.totalorder %s184, %s198
    %p200 = scmp.eq.s32.totalorder %s22, 0
    %p201 = por %p199, %p200
    %s203 = sadd.s32 %s202, 1
    %p206 = scmp.eq.s32.totalorder %s16, 1
    %p207 = scmp.ne.s32.totalorder %s202, %s204
    %p208 = scmp.eq.s32.totalorder %s16, 0
    %p209 = por %p207, %p208
    %p210 = scmp.ne.s32.totalorder %s202, %s204
    %p211 = scmp.eq.s32.totalorder %s21, 1
    %p212 = por %p210, %p211
    %p213 = scmp.ne.s32.totalorder %s204, %s205
    %p214 = scmp.eq.s32.totalorder %s21, 0
    %p215 = por %p213, %p214
    %p216 = scmp.ne.s32.totalorder %s204, %s205
    %p217 = scmp.eq.s32.totalorder %s22, 1
    %p218 = por %p216, %p217
    %p220 = scmp.ne.s32.totalorder %s205, %s219
    %p221 = scmp.eq.s32.totalorder %s22, 0
    %p222 = por %p220, %p221
    %s224 = sadd.s32 %s223, 1
    %p227 = scmp.eq.s32.totalorder %s16, 1
    %p228 = scmp.ne.s32.totalorder %s223, %s225
    %p229 = scmp.eq.s32.totalorder %s16, 0
    %p230 = por %p228, %p229
    %p231 = scmp.ne.s32.totalorder %s223, %s225
    %p232 = scmp.eq.s32.totalorder %s21, 1
    %p233 = por %p231, %p232
    %p234 = scmp.ne.s32.totalorder %s225, %s226
    %p235 = scmp.eq.s32.totalorder %s21, 0
    %p236 = por %p234, %p235
    %p237 = scmp.ne.s32.totalorder %s225, %s226
    %p238 = scmp.eq.s32.totalorder %s22, 1
    %p239 = por %p237, %p238
    %p241 = scmp.ne.s32.totalorder %s226, %s240
    %p242 = scmp.eq.s32.totalorder %s22, 0
    %p243 = por %p241, %p242
    %s244 = ssub.s32 %s16, %s23
    %p245 = scmp.eq.s32.totalorder %s244, 0
    %s247 = sadd.s32 %s246, 1
    %s248 = scalar_select %p245, %s246, %s247
    %p251 = pneg %p245
    %p252 = scmp.eq.s32.totalorder %s16, 1
    %p253 = por %p251, %p252
    %p254 = scmp.ne.s32.totalorder %s246, %s249
    %p255 = scmp.eq.s32.totalorder %s16, 0
    %p256 = por %p254, %p255
    %p257 = scmp.ne.s32.totalorder %s246, %s249
    %p258 = scmp.eq.s32.totalorder %s21, 1
    %p259 = por %p257, %p258
    %p260 = scmp.ne.s32.totalorder %s249, %s250
    %p261 = scmp.eq.s32.totalorder %s21, 0
    %p262 = por %p260, %p261
    %p263 = scmp.ne.s32.totalorder %s249, %s250
    %p264 = scmp.eq.s32.totalorder %s22, 1
    %p265 = por %p263, %p264
    %p267 = scmp.ne.s32.totalorder %s250, %s266
    %p268 = scmp.eq.s32.totalorder %s22, 0
    %p269 = por %p267, %p268
    %p270 = scmp.le.s32.totalorder 1, %s16
    %p271 = scmp.lt.s32.totalorder %s16, 3
    %p272 = pnand %p270, %p271
    %p273 = pneg %p272
    // Predicated region
    $region9: #{tpu_custom_call.1} parent=5 // pred_check
      _
    $region10: #{tpu_custom_call.1} parent=5 // pred_check_branch
      %275 = sbr.rel (%p272) target = $region12
    $region11: #{tpu_custom_call.1} parent=5 // pred_region
      %s276 = ssub.s32 %s16, 1
      // Predicated region
      $region13: #{tpu_custom_call.1} parent=11 // pred_check
        %p277 = pneg %p89
      $region14: #{tpu_custom_call.1} parent=11 // pred_check_branch
        %279 = sbr.rel (%p277) target = $region16
      $region15: #{tpu_custom_call.1} parent=11 // pred_region
        _
      $region16: #{tpu_custom_call.1} parent=11 // pred_fallthru
        _
      // Predicated region
      $region17: #{tpu_custom_call.1} parent=11 // pred_check
        %p280 = pneg %p110
      $region18: #{tpu_custom_call.1} parent=11 // pred_check_branch
        %282 = sbr.rel (%p280) target = $region20
      $region19: #{tpu_custom_call.1} parent=11 // pred_region
        _
      $region20: #{tpu_custom_call.1} parent=11 // pred_fallthru
        _
      // Predicated region
      $region21: #{tpu_custom_call.1} parent=11 // pred_check
        %p283 = pneg %p131
      $region22: #{tpu_custom_call.1} parent=11 // pred_check_branch
        %285 = sbr.rel (%p283) target = $region24
      $region23: #{tpu_custom_call.1} parent=11 // pred_region
        _
      $region24: #{tpu_custom_call.1} parent=11 // pred_fallthru
        _
      // Predicated region
      $region25: #{tpu_custom_call.1} parent=11 // pred_check
        %p286 = pneg %p152
      $region26: #{tpu_custom_call.1} parent=11 // pred_check_branch
        %288 = sbr.rel (%p286) target = $region28
      $region27: #{tpu_custom_call.1} parent=11 // pred_region
        _
      $region28: #{tpu_custom_call.1} parent=11 // pred_fallthru
        _
      // Predicated region
      $region29: #{tpu_custom_call.1} parent=11 // pred_check
        %p289 = pneg %p173
      $region30: #{tpu_custom_call.1} parent=11 // pred_check_branch
        %291 = sbr.rel (%p289) target = $region32
      $region31: #{tpu_custom_call.1} parent=11 // pred_region
        _
      $region32: #{tpu_custom_call.1} parent=11 // pred_fallthru
        _
      // Predicated region
      $region33: #{tpu_custom_call.1} parent=11 // pred_check
        %p292 = pneg %p194
      $region34: #{tpu_custom_call.1} parent=11 // pred_check_branch
        %294 = sbr.rel (%p292) target = $region36
      $region35: #{tpu_custom_call.1} parent=11 // pred_region
        _
      $region36: #{tpu_custom_call.1} parent=11 // pred_fallthru
        _
      // Predicated region
      $region37: #{tpu_custom_call.1} parent=11 // pred_check
        %p295 = pneg %p215
      $region38: #{tpu_custom_call.1} parent=11 // pred_check_branch
        %297 = sbr.rel (%p295) target = $region40
      $region39: #{tpu_custom_call.1} parent=11 // pred_region
        _
      $region40: #{tpu_custom_call.1} parent=11 // pred_fallthru
        _
      // Predicated region
      $region41: #{tpu_custom_call.1} parent=11 // pred_check
        %p298 = pneg %p236
      $region42: #{tpu_custom_call.1} parent=11 // pred_check_branch
        %300 = sbr.rel (%p298) target = $region44
      $region43: #{tpu_custom_call.1} parent=11 // pred_region
        _
      $region44: #{tpu_custom_call.1} parent=11 // pred_fallthru
        _
    $region12: #{tpu_custom_call.1} parent=5 // pred_fallthru
      _
    %p301 = scmp.lt.s32.totalorder %s16, 2
    // Predicated region
    $region45: #{tpu_custom_call.1} parent=5 // pred_check
      %p302 = pneg %p301
    $region46: #{tpu_custom_call.1} parent=5 // pred_check_branch
      %304 = sbr.rel (%p302) target = $region48
    $region47: #{tpu_custom_call.1} parent=5 // pred_region
      // Predicated region
      $region49: #{tpu_custom_call.1} parent=47 // pred_check
        %p305 = pneg %p36
      $region50: #{tpu_custom_call.1} parent=47 // pred_check_branch
        %307 = sbr.rel (%p305) target = $region52
      $region51: #{tpu_custom_call.1} parent=47 // pred_region
        %p308 = scmp.lt.s32.totalorder %s16, 1
        %s309 = scalar_select %p308, %s16, 1
        %s310 = smul.addr %s309, 8
        %s311 = smul.addr %s310, 8
        %s312 = scalar_lea.vmem %s0, %s311
      $region52: #{tpu_custom_call.1} parent=47 // pred_fallthru
        _
      // Predicated region
      $region53: #{tpu_custom_call.1} parent=47 // pred_check
        %p313 = pneg %p62
      $region54: #{tpu_custom_call.1} parent=47 // pred_check_branch
        %315 = sbr.rel (%p313) target = $region56
      $region55: #{tpu_custom_call.1} parent=47 // pred_region
        %p316 = scmp.lt.s32.totalorder %s16, 1
        %s317 = scalar_select %p316, %s16, 1
        %s318 = smul.addr %s317, 8
        %s319 = smul.addr %s318, 8
        %s320 = scalar_lea.vmem %s1, %s319
      $region56: #{tpu_custom_call.1} parent=47 // pred_fallthru
        _
    $region48: #{tpu_custom_call.1} parent=5 // pred_fallthru
      _
    %p321 = scmp.le.s32.totalorder 1, %s16
    %p322 = scmp.lt.s32.totalorder %s16, 3
    %p323 = pnand %p321, %p322
    %p324 = pneg %p323
    // Predicated region
    $region57: #{tpu_custom_call.1} parent=5 // pred_check
      _
    $region58: #{tpu_custom_call.1} parent=5 // pred_check_branch
      %326 = sbr.rel (%p323) target = $region60
    $region59: #{tpu_custom_call.1} parent=5 // pred_region
      %s327 = ssub.s32 %s16, 1
      %p328 = scmp.lt.s32.totalorder %s21, 1
      %s329 = scalar_select %p328, %s21, 1
      %s330 = smul.addr %s329, 8
      %s331 = smul.addr %s330, 8
      %s332 = scalar_lea.vmem %s0, %s331
      %p333 = pneg %p42
      %p334 = pneg %p39
      %p335 = scmp.lt.s32.totalorder %s21, 1
      %s336 = scalar_select %p335, %s21, 1
      %s337 = smul.addr %s336, 8
      %s338 = smul.addr %s337, 8
      %s339 = scalar_lea.vmem %s1, %s338
      %p340 = pneg %p68
      %p341 = pneg %p65
      %p342 = pneg %p89
      %p343 = pneg %p86
      %p344 = pneg %p110
      %p345 = pneg %p107
      %p346 = pneg %p131
      %p347 = pneg %p128
      %p348 = pneg %p152
      %p349 = pneg %p149
      %p350 = pneg %p173
      %p351 = pneg %p170
      %p352 = pneg %p194
      %p353 = pneg %p191
      %p354 = pneg %p215
      %p355 = pneg %p212
      %p356 = pneg %p236
      %p357 = pneg %p233
      %p358 = pneg %p262
      %p359 = pneg %p259
      %p360 = scmp.lt.s32.totalorder %s21, 1
      %s361 = scalar_select %p360, %s21, 1
      %s362 = smul.addr %s361, 8
      %s363 = smul.addr %s362, 8
      %s364 = scalar_lea.vmem %s10, %s363
      %p365 = scmp.lt.s32.totalorder %s21, 1
      %s366 = scalar_select %p365, %s21, 1
      %s367 = smul.addr %s366, 8
      %s368 = smul.addr %s367, 8
      %s369 = scalar_lea.vmem %s0, %s368
      %p370 = scmp.lt.s32.totalorder %s21, 1
      %s371 = scalar_select %p370, %s21, 1
      %s372 = smul.addr %s371, 8
      %s373 = smul.addr %s372, 8
      %s374 = scalar_lea.vmem %s1, %s373
      %p375 = scmp.lt.s32.totalorder %s21, 1
      %s376 = scalar_select %p375, %s21, 1
      %s377 = smul.addr %s376, 8
      %s378 = smul.addr %s377, 8
      %s379 = scalar_lea.vmem %s10, %s378
      %v380 = vld [vmem:[%s369] sm:$0xff]
      %v381 = vld [vmem:[%s369 + $0x8] sm:$0xff]
      %v382 = vld [vmem:[%s369 + $0x10] sm:$0xff]
      %v383 = vld [vmem:[%s369 + $0x18] sm:$0xff]
      %v384 = vld [vmem:[%s369 + $0x20] sm:$0xff]
      %v385 = vld [vmem:[%s369 + $0x28] sm:$0xff]
      %v386 = vld [vmem:[%s369 + $0x30] sm:$0xff]
      %v387 = vld [vmem:[%s369 + $0x38] sm:$0xff]
      %v388 = vld [vmem:[%s374] sm:$0xff]
      %v389 = vld [vmem:[%s374 + $0x8] sm:$0xff]
      %v390 = vld [vmem:[%s374 + $0x10] sm:$0xff]
      %v391 = vld [vmem:[%s374 + $0x18] sm:$0xff]
      %v392 = vld [vmem:[%s374 + $0x20] sm:$0xff]
      %v393 = vld [vmem:[%s374 + $0x28] sm:$0xff]
      %v394 = vld [vmem:[%s374 + $0x30] sm:$0xff]
      %v395 = vld [vmem:[%s374 + $0x38] sm:$0xff]
      %v396 = vld [vmem:[%s2] sm:$0xff]
      %v397 = vld [vmem:[%s2 + $0x8] sm:$0xff]
      %v398 = vld [vmem:[%s2 + $0x10] sm:$0xff]
      %v399 = vld [vmem:[%s2 + $0x18] sm:$0xff]
      %v400 = vld [vmem:[%s3] sm:$0x1]
      %v402 = vlaneseq
      %v403 = vshrl.u32 %v402, 7
      %v404 = vsub.s32 0, %v403
      %v405 = vrot.slane %v400, %v404
      %vm407 = vcmask 261120
      %v409 = vsel %vm407, %v380, 0
      %v412 = vsel %vm407, %v381, 0
      %v415 = vsel %vm407, %v382, 0
      %v418 = vsel %vm407, %v383, 0
      %v421 = vsel %vm407, %v384, 0
      %v424 = vsel %vm407, %v385, 0
      %v427 = vsel %vm407, %v386, 0
      %v430 = vsel %vm407, %v387, 0
      %432 = vmatprep.subr.mxu0 0.0
      %433 = vmatpush1.msra.mxu0 %v396
      %434 = vmatprep.subr.mxu0 0.0
      %435 = vmatpush1.msra.mxu0 %v397
      %436 = vmatprep.subr.mxu0 0.0
      %437 = vmatpush1.msra.mxu0 %v398
      %438 = vmatprep.subr.mxu0 0.0
      %439 = vmatpush1.msra.mxu0 %v399
      %440 = vmatprep.subr.mxu0 0.0
      %441 = vmatpush1.msra.mxu0 0.0
      %442 = vmatprep.subr.mxu0 0.0
      %443 = vmatpush1.msra.mxu0 0.0
      %444 = vmatprep.subr.mxu0 0.0
      %445 = vmatpush1.msra.mxu0 0.0
      %446 = vmatprep.subr.mxu0 0.0
      %447 = vmatpush1.msra.mxu0 0.0
      %448 = vmatprep.subr.mxu0 0.0
      %449 = vmatpush1.msra.mxu0 0.0
      %450 = vmatprep.subr.mxu0 0.0
      %451 = vmatpush1.msra.mxu0 0.0
      %452 = vmatprep.subr.mxu0 0.0
      %453 = vmatpush1.msra.mxu0 0.0
      %454 = vmatprep.subr.mxu0 0.0
      %455 = vmatpush1.msra.mxu0 0.0
      %456 = vmatprep.subr.mxu0 0.0
      %457 = vmatpush1.msra.mxu0 0.0
      %458 = vmatprep.subr.mxu0 0.0
      %459 = vmatpush1.msra.mxu0 0.0
      %460 = vmatprep.subr.mxu0 0.0
      %461 = vmatpush1.msra.mxu0 0.0
      %462 = vmatprep.subr.mxu0 0.0
      %463 = vmatpush1.msra.mxu0 0.0
      %464 = vmatprep.subr.mxu0 0.0
      %465 = vmatpush1.msra.mxu0 0.0
      %466 = vmatprep.subr.mxu0 0.0
      %467 = vmatpush1.msra.mxu0 0.0
      %468 = vmatprep.subr.mxu0 0.0
      %469 = vmatpush1.msra.mxu0 0.0
      %470 = vmatprep.subr.mxu0 0.0
      %471 = vmatpush1.msra.mxu0 0.0
      %472 = vmatprep.subr.mxu0 0.0
      %473 = vmatpush1.msra.mxu0 0.0
      %474 = vmatprep.subr.mxu0 0.0
      %475 = vmatpush1.msra.mxu0 0.0
      %476 = vmatprep.subr.mxu0 0.0
      %477 = vmatpush1.msra.mxu0 0.0
      %478 = vmatprep.subr.mxu0 0.0
      %479 = vmatpush1.msra.mxu0 0.0
      %480 = vmatprep.subr.mxu0 0.0
      %481 = vmatpush1.msra.mxu0 0.0
      %482 = vmatprep.subr.mxu0 0.0
      %483 = vmatpush1.msra.mxu0 0.0
      %484 = vmatprep.subr.mxu0 0.0
      %485 = vmatpush1.msra.mxu0 0.0
      %486 = vmatprep.subr.mxu0 0.0
      %487 = vmatpush1.msra.mxu0 0.0
      %488 = vmatprep.subr.mxu0 0.0
      %489 = vmatpush1.msra.mxu0 0.0
      %490 = vmatprep.subr.mxu0 0.0
      %491 = vmatpush1.msra.mxu0 0.0
      %492 = vmatprep.subr.mxu0 0.0
      %493 = vmatpush1.msra.mxu0 0.0
      %494 = vmatprep.subr.mxu0 0.0
      %495 = vmatpush1.msra.mxu0 0.0
      %496 = vmatprep.mubr.f32.mxu0 0.0
      %497 = vmatmul.mubr.f32.gmra.mrb[0].mxu0 %v409
      %v498 = vpop.f32.mrb[0].mxu0
      %v499 = vadd.f32 %v405, %v498
      %v500 = vpop.f32.mrb[0].mxu0
      %501 = vmatprep.mubr.f32.mxu0 0.0
      %502 = vmatmul.mubr.f32.gmra.mrb[0].mxu0 %v412
      %v503 = vpop.f32.mrb[0].mxu0
      %v504 = vadd.f32 %v405, %v503
      %v505 = vpop.f32.mrb[0].mxu0
      %506 = vmatprep.mubr.f32.mxu0 0.0
      %507 = vmatmul.mubr.f32.gmra.mrb[0].mxu0 %v415
      %v508 = vpop.f32.mrb[0].mxu0
      %v509 = vadd.f32 %v405, %v508
      %v510 = vpop.f32.mrb[0].mxu0
      %511 = vmatprep.mubr.f32.mxu0 0.0
      %512 = vmatmul.mubr.f32.gmra.mrb[0].mxu0 %v418
      %v513 = vpop.f32.mrb[0].mxu0
      %v514 = vadd.f32 %v405, %v513
      %v515 = vpop.f32.mrb[0].mxu0
      %516 = vmatprep.mubr.f32.mxu0 0.0
      %517 = vmatmul.mubr.f32.gmra.mrb[0].mxu0 %v421
      %v518 = vpop.f32.mrb[0].mxu0
      %v519 = vadd.f32 %v405, %v518
      %v520 = vpop.f32.mrb[0].mxu0
      %521 = vmatprep.mubr.f32.mxu0 0.0
      %522 = vmatmul.mubr.f32.gmra.mrb[0].mxu0 %v424
      %v523 = vpop.f32.mrb[0].mxu0
      %v524 = vadd.f32 %v405, %v523
      %v525 = vpop.f32.mrb[0].mxu0
      %526 = vmatprep.mubr.f32.mxu0 0.0
      %527 = vmatmul.mubr.f32.gmra.mrb[0].mxu0 %v427
      %v528 = vpop.f32.mrb[0].mxu0
      %v529 = vadd.f32 %v405, %v528
      %v530 = vpop.f32.mrb[0].mxu0
      %531 = vmatprep.mubr.f32.mxu0 0.0
      %532 = vmatmul.mubr.f32.gmra.mrb[0].mxu0 %v430
      %v533 = vpop.f32.mrb[0].mxu0
      %v534 = vadd.f32 %v405, %v533
      %v535 = vpop.f32.mrb[0].mxu0
      %536 = vdwg.mxu0
      %v537 = vld [vmem:[%s4] sm:$0xff]
      %v538 = vld [vmem:[%s4 + $0x8] sm:$0xff]
      %v539 = vld [vmem:[%s4 + $0x10] sm:$0xff]
      %v540 = vld [vmem:[%s4 + $0x18] sm:$0xff]
      %v541 = vld [vmem:[%s5] sm:$0x1]
      %v543 = vlaneseq
      %v544 = vshrl.u32 %v543, 7
      %v545 = vsub.s32 0, %v544
      %v546 = vrot.slane %v541, %v545
      %v549 = vsel %vm407, %v388, 0
      %v552 = vsel %vm407, %v389, 0
      %v555 = vsel %vm407, %v390, 0
      %v558 = vsel %vm407, %v391, 0
      %v561 = vsel %vm407, %v392, 0
      %v564 = vsel %vm407, %v393, 0
      %v567 = vsel %vm407, %v394, 0
      %v570 = vsel %vm407, %v395, 0
      %572 = vmatprep.subr.mxu0 0.0
      %573 = vmatpush1.msra.mxu0 %v537
      %574 = vmatprep.subr.mxu0 0.0
      %575 = vmatpush1.msra.mxu0 %v538
      %576 = vmatprep.subr.mxu0 0.0
      %577 = vmatpush1.msra.mxu0 %v539
      %578 = vmatprep.subr.mxu0 0.0
      %579 = vmatpush1.msra.mxu0 %v540
      %580 = vmatprep.subr.mxu0 0.0
      %581 = vmatpush1.msra.mxu0 0.0
      %582 = vmatprep.subr.mxu0 0.0
      %583 = vmatpush1.msra.mxu0 0.0
      %584 = vmatprep.subr.mxu0 0.0
      %585 = vmatpush1.msra.mxu0 0.0
      %586 = vmatprep.subr.mxu0 0.0
      %587 = vmatpush1.msra.mxu0 0.0
      %588 = vmatprep.subr.mxu0 0.0
      %589 = vmatpush1.msra.mxu0 0.0
      %590 = vmatprep.subr.mxu0 0.0
      %591 = vmatpush1.msra.mxu0 0.0
      %592 = vmatprep.subr.mxu0 0.0
      %593 = vmatpush1.msra.mxu0 0.0
      %594 = vmatprep.subr.mxu0 0.0
      %595 = vmatpush1.msra.mxu0 0.0
      %596 = vmatprep.subr.mxu0 0.0
      %597 = vmatpush1.msra.mxu0 0.0
      %598 = vmatprep.subr.mxu0 0.0
      %599 = vmatpush1.msra.mxu0 0.0
      %600 = vmatprep.subr.mxu0 0.0
      %601 = vmatpush1.msra.mxu0 0.0
      %602 = vmatprep.subr.mxu0 0.0
      %603 = vmatpush1.msra.mxu0 0.0
      %604 = vmatprep.subr.mxu0 0.0
      %605 = vmatpush1.msra.mxu0 0.0
      %606 = vmatprep.subr.mxu0 0.0
      %607 = vmatpush1.msra.mxu0 0.0
      %608 = vmatprep.subr.mxu0 0.0
      %609 = vmatpush1.msra.mxu0 0.0
      %610 = vmatprep.subr.mxu0 0.0
      %611 = vmatpush1.msra.mxu0 0.0
      %612 = vmatprep.subr.mxu0 0.0
      %613 = vmatpush1.msra.mxu0 0.0
      %614 = vmatprep.subr.mxu0 0.0
      %615 = vmatpush1.msra.mxu0 0.0
      %616 = vmatprep.subr.mxu0 0.0
      %617 = vmatpush1.msra.mxu0 0.0
      %618 = vmatprep.subr.mxu0 0.0
      %619 = vmatpush1.msra.mxu0 0.0
      %620 = vmatprep.subr.mxu0 0.0
      %621 = vmatpush1.msra.mxu0 0.0
      %622 = vmatprep.subr.mxu0 0.0
      %623 = vmatpush1.msra.mxu0 0.0
      %624 = vmatprep.subr.mxu0 0.0
      %625 = vmatpush1.msra.mxu0 0.0
      %626 = vmatprep.subr.mxu0 0.0
      %627 = vmatpush1.msra.mxu0 0.0
      %628 = vmatprep.subr.mxu0 0.0
      %629 = vmatpush1.msra.mxu0 0.0
      %630 = vmatprep.subr.mxu0 0.0
      %631 = vmatpush1.msra.mxu0 0.0
      %632 = vmatprep.subr.mxu0 0.0
      %633 = vmatpush1.msra.mxu0 0.0
      %634 = vmatprep.subr.mxu0 0.0
      %635 = vmatpush1.msra.mxu0 0.0
      %636 = vmatprep.mubr.f32.mxu0 0.0
      %637 = vmatmul.mubr.f32.gmra.mrb[0].mxu0 %v549
      %v638 = vpop.f32.mrb[0].mxu0
      %v639 = vadd.f32 %v546, %v638
      %v640 = vpop.f32.mrb[0].mxu0
      %641 = vmatprep.mubr.f32.mxu0 0.0
      %642 = vmatmul.mubr.f32.gmra.mrb[0].mxu0 %v552
      %v643 = vpop.f32.mrb[0].mxu0
      %v644 = vadd.f32 %v546, %v643
      %v645 = vpop.f32.mrb[0].mxu0
      %646 = vmatprep.mubr.f32.mxu0 0.0
      %647 = vmatmul.mubr.f32.gmra.mrb[0].mxu0 %v555
      %v648 = vpop.f32.mrb[0].mxu0
      %v649 = vadd.f32 %v546, %v648
      %v650 = vpop.f32.mrb[0].mxu0
      %651 = vmatprep.mubr.f32.mxu0 0.0
      %652 = vmatmul.mubr.f32.gmra.mrb[0].mxu0 %v558
      %v653 = vpop.f32.mrb[0].mxu0
      %v654 = vadd.f32 %v546, %v653
      %v655 = vpop.f32.mrb[0].mxu0
      %656 = vmatprep.mubr.f32.mxu0 0.0
      %657 = vmatmul.mubr.f32.gmra.mrb[0].mxu0 %v561
      %v658 = vpop.f32.mrb[0].mxu0
      %v659 = vadd.f32 %v546, %v658
      %v660 = vpop.f32.mrb[0].mxu0
      %661 = vmatprep.mubr.f32.mxu0 0.0
      %662 = vmatmul.mubr.f32.gmra.mrb[0].mxu0 %v564
      %v663 = vpop.f32.mrb[0].mxu0
      %v664 = vadd.f32 %v546, %v663
      %v665 = vpop.f32.mrb[0].mxu0
      %666 = vmatprep.mubr.f32.mxu0 0.0
      %667 = vmatmul.mubr.f32.gmra.mrb[0].mxu0 %v567
      %v668 = vpop.f32.mrb[0].mxu0
      %v669 = vadd.f32 %v546, %v668
      %v670 = vpop.f32.mrb[0].mxu0
      %671 = vmatprep.mubr.f32.mxu0 0.0
      %672 = vmatmul.mubr.f32.gmra.mrb[0].mxu0 %v570
      %v673 = vpop.f32.mrb[0].mxu0
      %v674 = vadd.f32 %v546, %v673
      %v675 = vpop.f32.mrb[0].mxu0
      %676 = vdwg.mxu0
      %v677 = vld [vmem:[%s8] sm:$0xff]
      %v678 = vld [vmem:[%s8 + $0x8] sm:$0xff]
      %v679 = vld [vmem:[%s8 + $0x10] sm:$0xff]
      %v680 = vld [vmem:[%s8 + $0x18] sm:$0xff]
      %v681 = vlaneseq
      %v682 = vand.u32 %v681, 127
      %vm683 = vcmp.ge.s32.totalorder %v682, 0
      %vm684 = vcmp.lt.s32.totalorder %v682, 8
      %vm685 = vmand %vm683, %vm684
      %v686 = vsel %vm685, 1.0, 0.0
      %v687 = vmul.f32 %v499, %v686
      %v688 = vmul.f32 %v504, %v686
      %v689 = vmul.f32 %v509, %v686
      %v690 = vmul.f32 %v514, %v686
      %v691 = vmul.f32 %v519, %v686
      %v692 = vmul.f32 %v524, %v686
      %v693 = vmul.f32 %v529, %v686
      %v694 = vmul.f32 %v534, %v686
      %v696 = vsel %vm407, %v687, 0
      %v699 = vsel %vm407, %v688, 0
      %v702 = vsel %vm407, %v689, 0
      %v705 = vsel %vm407, %v690, 0
      %v708 = vsel %vm407, %v691, 0
      %v711 = vsel %vm407, %v692, 0
      %v714 = vsel %vm407, %v693, 0
      %v717 = vsel %vm407, %v694, 0
      %v720 = vsel %vm407, %v639, 0
      %v723 = vsel %vm407, %v644, 0
      %v726 = vsel %vm407, %v649, 0
      %v729 = vsel %vm407, %v654, 0
      %v732 = vsel %vm407, %v659, 0
      %v735 = vsel %vm407, %v664, 0
      %v738 = vsel %vm407, %v669, 0
      %v741 = vsel %vm407, %v674, 0
      %743 = vmatprep.subr.mxu0 0.0
      %744 = vmatpush1.xpose.msra.mxu0 %v720
      %745 = vmatprep.subr.mxu0 0.0
      %746 = vmatpush1.xpose.msra.mxu0 %v723
      %747 = vmatprep.subr.mxu0 0.0
      %748 = vmatpush1.xpose.msra.mxu0 %v726
      %749 = vmatprep.subr.mxu0 0.0
      %750 = vmatpush1.xpose.msra.mxu0 %v729
      %751 = vmatprep.subr.mxu0 0.0
      %752 = vmatpush1.xpose.msra.mxu0 %v732
      %753 = vmatprep.subr.mxu0 0.0
      %754 = vmatpush1.xpose.msra.mxu0 %v735
      %755 = vmatprep.subr.mxu0 0.0
      %756 = vmatpush1.xpose.msra.mxu0 %v738
      %757 = vmatprep.subr.mxu0 0.0
      %758 = vmatpush1.xpose.msra.mxu0 %v741
      %759 = vmatprep.subr.mxu0 0.0
      %760 = vmatpush1.xpose.msra.mxu0 0.0
      %761 = vmatprep.subr.mxu0 0.0
      %762 = vmatpush1.xpose.msra.mxu0 0.0
      %763 = vmatprep.subr.mxu0 0.0
      %764 = vmatpush1.xpose.msra.mxu0 0.0
      %765 = vmatprep.subr.mxu0 0.0
      %766 = vmatpush1.xpose.msra.mxu0 0.0
      %767 = vmatprep.subr.mxu0 0.0
      %768 = vmatpush1.xpose.msra.mxu0 0.0
      %769 = vmatprep.subr.mxu0 0.0
      %770 = vmatpush1.xpose.msra.mxu0 0.0
      %771 = vmatprep.subr.mxu0 0.0
      %772 = vmatpush1.xpose.msra.mxu0 0.0
      %773 = vmatprep.subr.mxu0 0.0
      %774 = vmatpush1.xpose.msra.mxu0 0.0
      %775 = vmatprep.subr.mxu0 0.0
      %776 = vmatpush1.xpose.msra.mxu0 0.0
      %777 = vmatprep.subr.mxu0 0.0
      %778 = vmatpush1.xpose.msra.mxu0 0.0
      %779 = vmatprep.subr.mxu0 0.0
      %780 = vmatpush1.xpose.msra.mxu0 0.0
      %781 = vmatprep.subr.mxu0 0.0
      %782 = vmatpush1.xpose.msra.mxu0 0.0
      %783 = vmatprep.subr.mxu0 0.0
      %784 = vmatpush1.xpose.msra.mxu0 0.0
      %785 = vmatprep.subr.mxu0 0.0
      %786 = vmatpush1.xpose.msra.mxu0 0.0
      %787 = vmatprep.subr.mxu0 0.0
      %788 = vmatpush1.xpose.msra.mxu0 0.0
      %789 = vmatprep.subr.mxu0 0.0
      %790 = vmatpush1.xpose.msra.mxu0 0.0
      %791 = vmatprep.subr.mxu0 0.0
      %792 = vmatpush1.xpose.msra.mxu0 0.0
      %793 = vmatprep.subr.mxu0 0.0
      %794 = vmatpush1.xpose.msra.mxu0 0.0
      %795 = vmatprep.subr.mxu0 0.0
      %796 = vmatpush1.xpose.msra.mxu0 0.0
      %797 = vmatprep.subr.mxu0 0.0
      %798 = vmatpush1.xpose.msra.mxu0 0.0
      %799 = vmatprep.subr.mxu0 0.0
      %800 = vmatpush1.xpose.msra.mxu0 0.0
      %801 = vmatprep.subr.mxu0 0.0
      %802 = vmatpush1.xpose.msra.mxu0 0.0
      %803 = vmatprep.subr.mxu0 0.0
      %804 = vmatpush1.xpose.msra.mxu0 0.0
      %805 = vmatprep.subr.mxu0 0.0
      %806 = vmatpush1.xpose.msra.mxu0 0.0
      %807 = vmatprep.mubr.f32.mxu0 0.0
      %808 = vmatmul.mubr.f32.gmra.mrb[0].mxu0 %v696
      %v809 = vpop.f32.mrb[0].mxu0
      %v810 = vadd.f32 0.0, %v809
      %v811 = vpop.f32.mrb[0].mxu0
      %812 = vmatprep.mubr.f32.mxu0 0.0
      %813 = vmatmul.mubr.f32.gmra.mrb[0].mxu0 %v699
      %v814 = vpop.f32.mrb[0].mxu0
      %v815 = vadd.f32 0.0, %v814
      %v816 = vpop.f32.mrb[0].mxu0
      %817 = vmatprep.mubr.f32.mxu0 0.0
      %818 = vmatmul.mubr.f32.gmra.mrb[0].mxu0 %v702
      %v819 = vpop.f32.mrb[0].mxu0
      %v820 = vadd.f32 0.0, %v819
      %v821 = vpop.f32.mrb[0].mxu0
      %822 = vmatprep.mubr.f32.mxu0 0.0
      %823 = vmatmul.mubr.f32.gmra.mrb[0].mxu0 %v705
      %v824 = vpop.f32.mrb[0].mxu0
      %v825 = vadd.f32 0.0, %v824
      %v826 = vpop.f32.mrb[0].mxu0
      %827 = vmatprep.mubr.f32.mxu0 0.0
      %828 = vmatmul.mubr.f32.gmra.mrb[0].mxu0 %v708
      %v829 = vpop.f32.mrb[0].mxu0
      %v830 = vadd.f32 0.0, %v829
      %v831 = vpop.f32.mrb[0].mxu0
      %832 = vmatprep.mubr.f32.mxu0 0.0
      %833 = vmatmul.mubr.f32.gmra.mrb[0].mxu0 %v711
      %v834 = vpop.f32.mrb[0].mxu0
      %v835 = vadd.f32 0.0, %v834
      %v836 = vpop.f32.mrb[0].mxu0
      %837 = vmatprep.mubr.f32.mxu0 0.0
      %838 = vmatmul.mubr.f32.gmra.mrb[0].mxu0 %v714
      %v839 = vpop.f32.mrb[0].mxu0
      %v840 = vadd.f32 0.0, %v839
      %v841 = vpop.f32.mrb[0].mxu0
      %842 = vmatprep.mubr.f32.mxu0 0.0
      %843 = vmatmul.mubr.f32.gmra.mrb[0].mxu0 %v717
      %v844 = vpop.f32.mrb[0].mxu0
      %v845 = vadd.f32 0.0, %v844
      %v846 = vpop.f32.mrb[0].mxu0
      %847 = vdwg.mxu0
      %v848 = vmul.f32 %v810, 0.35355338
      %v849 = vmul.f32 %v815, 0.35355338
      %v850 = vmul.f32 %v820, 0.35355338
      %v851 = vmul.f32 %v825, 0.35355338
      %v852 = vmul.f32 %v830, 0.35355338
      %v853 = vmul.f32 %v835, 0.35355338
      %v854 = vmul.f32 %v840, 0.35355338
      %v855 = vmul.f32 %v845, 0.35355338
      %vm856 = vcmask 523264
      %v857 = vsel %vm856, %v848, -inf
      %858 = vmax.xlane.f32.xlu0 %v857
      %v859 = vpop.xlane.xlu0 %858
      %v860 = vsel %vm856, %v849, -inf
      %861 = vmax.xlane.f32.xlu0 %v860
      %v862 = vpop.xlane.xlu0 %861
      %v863 = vsel %vm856, %v850, -inf
      %864 = vmax.xlane.f32.xlu0 %v863
      %v865 = vpop.xlane.xlu0 %864
      %v866 = vsel %vm856, %v851, -inf
      %867 = vmax.xlane.f32.xlu0 %v866
      %v868 = vpop.xlane.xlu0 %867
      %v869 = vsel %vm856, %v852, -inf
      %870 = vmax.xlane.f32.xlu0 %v869
      %v871 = vpop.xlane.xlu0 %870
      %v872 = vsel %vm856, %v853, -inf
      %873 = vmax.xlane.f32.xlu0 %v872
      %v874 = vpop.xlane.xlu0 %873
      %v875 = vsel %vm856, %v854, -inf
      %876 = vmax.xlane.f32.xlu0 %v875
      %v877 = vpop.xlane.xlu0 %876
      %v878 = vsel %vm856, %v855, -inf
      %879 = vmax.xlane.f32.xlu0 %v878
      %v880 = vpop.xlane.xlu0 %879
      %v881 = vsub.f32 %v848, %v859
      %v882 = vsub.f32 %v849, %v862
      %v883 = vsub.f32 %v850, %v865
      %v884 = vsub.f32 %v851, %v868
      %v885 = vsub.f32 %v852, %v871
      %v886 = vsub.f32 %v853, %v874
      %v887 = vsub.f32 %v854, %v877
      %v888 = vsub.f32 %v855, %v880
      %v889 = vmul.f32 %v881, 1.442695
      %v890 = vpow.pop %v889
      %v891 = vmul.f32 %v882, 1.442695
      %v892 = vpow.pop %v891
      %v893 = vmul.f32 %v883, 1.442695
      %v894 = vpow.pop %v893
      %v895 = vmul.f32 %v884, 1.442695
      %v896 = vpow.pop %v895
      %v897 = vmul.f32 %v885, 1.442695
      %v898 = vpow.pop %v897
      %v899 = vmul.f32 %v886, 1.442695
      %v900 = vpow.pop %v899
      %v901 = vmul.f32 %v887, 1.442695
      %v902 = vpow.pop %v901
      %v903 = vmul.f32 %v888, 1.442695
      %v904 = vpow.pop %v903
      %v905 = vsel %vm856, %v890, 0.0
      %906 = vadd.xlane.f32.xlu0 %v905
      %v907 = vpop.xlane.xlu0 %906
      %v908 = vsel %vm856, %v892, 0.0
      %909 = vadd.xlane.f32.xlu0 %v908
      %v910 = vpop.xlane.xlu0 %909
      %v911 = vsel %vm856, %v894, 0.0
      %912 = vadd.xlane.f32.xlu0 %v911
      %v913 = vpop.xlane.xlu0 %912
      %v914 = vsel %vm856, %v896, 0.0
      %915 = vadd.xlane.f32.xlu0 %v914
      %v916 = vpop.xlane.xlu0 %915
      %v917 = vsel %vm856, %v898, 0.0
      %918 = vadd.xlane.f32.xlu0 %v917
      %v919 = vpop.xlane.xlu0 %918
      %v920 = vsel %vm856, %v900, 0.0
      %921 = vadd.xlane.f32.xlu0 %v920
      %v922 = vpop.xlane.xlu0 %921
      %v923 = vsel %vm856, %v902, 0.0
      %924 = vadd.xlane.f32.xlu0 %v923
      %v925 = vpop.xlane.xlu0 %924
      %v926 = vsel %vm856, %v904, 0.0
      %927 = vadd.xlane.f32.xlu0 %v926
      %v928 = vpop.xlane.xlu0 %927
      %v929 = vrcp.pop %v907
      %v930 = vmul.f32 %v890, %v929
      %v931 = vrcp.pop %v910
      %v932 = vmul.f32 %v892, %v931
      %v933 = vrcp.pop %v913
      %v934 = vmul.f32 %v894, %v933
      %v935 = vrcp.pop %v916
      %v936 = vmul.f32 %v896, %v935
      %v937 = vrcp.pop %v919
      %v938 = vmul.f32 %v898, %v937
      %v939 = vrcp.pop %v922
      %v940 = vmul.f32 %v900, %v939
      %v941 = vrcp.pop %v925
      %v942 = vmul.f32 %v902, %v941
      %v943 = vrcp.pop %v928
      %v944 = vmul.f32 %v904, %v943
      %946 = vrot.lane.b32.xlu0 %v686, 32
      %v947 = vpop.permute.xlu0 %946
      %v949 = vmul.f32 %v639, %v947
      %v950 = vmul.f32 %v644, %v947
      %v951 = vmul.f32 %v649, %v947
      %v952 = vmul.f32 %v654, %v947
      %v953 = vmul.f32 %v659, %v947
      %v954 = vmul.f32 %v664, %v947
      %v955 = vmul.f32 %v669, %v947
      %v956 = vmul.f32 %v674, %v947
      %965 = vrot.lane.b32.xlu0 %v949, 96
      %v966 = vpop.permute.xlu0 %965
      %967 = vrot.lane.b32.xlu0 %v950, 96
      %v968 = vpop.permute.xlu0 %967
      %969 = vrot.lane.b32.xlu0 %v951, 96
      %v970 = vpop.permute.xlu0 %969
      %971 = vrot.lane.b32.xlu0 %v952, 96
      %v972 = vpop.permute.xlu0 %971
      %973 = vrot.lane.b32.xlu0 %v953, 96
      %v974 = vpop.permute.xlu0 %973
      %975 = vrot.lane.b32.xlu0 %v954, 96
      %v976 = vpop.permute.xlu0 %975
      %977 = vrot.lane.b32.xlu0 %v955, 96
      %v978 = vpop.permute.xlu0 %977
      %979 = vrot.lane.b32.xlu0 %v956, 96
      %v980 = vpop.permute.xlu0 %979
      %v990 = vsel %vm856, %v930, 0
      %v993 = vsel %vm856, %v932, 0
      %v996 = vsel %vm856, %v934, 0
      %v999 = vsel %vm856, %v936, 0
      %v1002 = vsel %vm856, %v938, 0
      %v1005 = vsel %vm856, %v940, 0
      %v1008 = vsel %vm856, %v942, 0
      %v1011 = vsel %vm856, %v944, 0
      %1013 = vmatprep.subr.mxu0 0.0
      %1014 = vmatpush1.msra.mxu0 %v966
      %1015 = vmatprep.subr.mxu0 0.0
      %1016 = vmatpush1.msra.mxu0 %v968
      %1017 = vmatprep.subr.mxu0 0.0
      %1018 = vmatpush1.msra.mxu0 %v970
      %1019 = vmatprep.subr.mxu0 0.0
      %1020 = vmatpush1.msra.mxu0 %v972
      %1021 = vmatprep.subr.mxu0 0.0
      %1022 = vmatpush1.msra.mxu0 %v974
      %1023 = vmatprep.subr.mxu0 0.0
      %1024 = vmatpush1.msra.mxu0 %v976
      %1025 = vmatprep.subr.mxu0 0.0
      %1026 = vmatpush1.msra.mxu0 %v978
      %1027 = vmatprep.subr.mxu0 0.0
      %1028 = vmatpush1.msra.mxu0 %v980
      %1029 = vmatprep.subr.mxu0 0.0
      %1030 = vmatpush1.msra.mxu0 0.0
      %1031 = vmatprep.subr.mxu0 0.0
      %1032 = vmatpush1.msra.mxu0 0.0
      %1033 = vmatprep.subr.mxu0 0.0
      %1034 = vmatpush1.msra.mxu0 0.0
      %1035 = vmatprep.subr.mxu0 0.0
      %1036 = vmatpush1.msra.mxu0 0.0
      %1037 = vmatprep.subr.mxu0 0.0
      %1038 = vmatpush1.msra.mxu0 0.0
      %1039 = vmatprep.subr.mxu0 0.0
      %1040 = vmatpush1.msra.mxu0 0.0
      %1041 = vmatprep.subr.mxu0 0.0
      %1042 = vmatpush1.msra.mxu0 0.0
      %1043 = vmatprep.subr.mxu0 0.0
      %1044 = vmatpush1.msra.mxu0 0.0
      %1045 = vmatprep.subr.mxu0 0.0
      %1046 = vmatpush1.msra.mxu0 0.0
      %1047 = vmatprep.subr.mxu0 0.0
      %1048 = vmatpush1.msra.mxu0 0.0
      %1049 = vmatprep.subr.mxu0 0.0
      %1050 = vmatpush1.msra.mxu0 0.0
      %1051 = vmatprep.subr.mxu0 0.0
      %1052 = vmatpush1.msra.mxu0 0.0
      %1053 = vmatprep.subr.mxu0 0.0
      %1054 = vmatpush1.msra.mxu0 0.0
      %1055 = vmatprep.subr.mxu0 0.0
      %1056 = vmatpush1.msra.mxu0 0.0
      %1057 = vmatprep.subr.mxu0 0.0
      %1058 = vmatpush1.msra.mxu0 0.0
      %1059 = vmatprep.subr.mxu0 0.0
      %1060 = vmatpush1.msra.mxu0 0.0
      %1061 = vmatprep.subr.mxu0 0.0
      %1062 = vmatpush1.msra.mxu0 0.0
      %1063 = vmatprep.subr.mxu0 0.0
      %1064 = vmatpush1.msra.mxu0 0.0
      %1065 = vmatprep.subr.mxu0 0.0
      %1066 = vmatpush1.msra.mxu0 0.0
      %1067 = vmatprep.subr.mxu0 0.0
      %1068 = vmatpush1.msra.mxu0 0.0
      %1069 = vmatprep.subr.mxu0 0.0
      %1070 = vmatpush1.msra.mxu0 0.0
      %1071 = vmatprep.subr.mxu0 0.0
      %1072 = vmatpush1.msra.mxu0 0.0
      %1073 = vmatprep.subr.mxu0 0.0
      %1074 = vmatpush1.msra.mxu0 0.0
      %1075 = vmatprep.subr.mxu0 0.0
      %1076 = vmatpush1.msra.mxu0 0.0
      %1077 = vmatprep.mubr.f32.mxu0 0.0
      %1078 = vmatmul.mubr.f32.gmra.mrb[0].mxu0 %v990
      %v1079 = vpop.f32.mrb[0].mxu0
      %v1080 = vadd.f32 0.0, %v1079
      %v1081 = vpop.f32.mrb[0].mxu0
      %1082 = vmatprep.mubr.f32.mxu0 0.0
      %1083 = vmatmul.mubr.f32.gmra.mrb[0].mxu0 %v993
      %v1084 = vpop.f32.mrb[0].mxu0
      %v1085 = vadd.f32 0.0, %v1084
      %v1086 = vpop.f32.mrb[0].mxu0
      %1087 = vmatprep.mubr.f32.mxu0 0.0
      %1088 = vmatmul.mubr.f32.gmra.mrb[0].mxu0 %v996
      %v1089 = vpop.f32.mrb[0].mxu0
      %v1090 = vadd.f32 0.0, %v1089
      %v1091 = vpop.f32.mrb[0].mxu0
      %1092 = vmatprep.mubr.f32.mxu0 0.0
      %1093 = vmatmul.mubr.f32.gmra.mrb[0].mxu0 %v999
      %v1094 = vpop.f32.mrb[0].mxu0
      %v1095 = vadd.f32 0.0, %v1094
      %v1096 = vpop.f32.mrb[0].mxu0
      %1097 = vmatprep.mubr.f32.mxu0 0.0
      %1098 = vmatmul.mubr.f32.gmra.mrb[0].mxu0 %v1002
      %v1099 = vpop.f32.mrb[0].mxu0
      %v1100 = vadd.f32 0.0, %v1099
      %v1101 = vpop.f32.mrb[0].mxu0
      %1102 = vmatprep.mubr.f32.mxu0 0.0
      %1103 = vmatmul.mubr.f32.gmra.mrb[0].mxu0 %v1005
      %v1104 = vpop.f32.mrb[0].mxu0
      %v1105 = vadd.f32 0.0, %v1104
      %v1106 = vpop.f32.mrb[0].mxu0
      %1107 = vmatprep.mubr.f32.mxu0 0.0
      %1108 = vmatmul.mubr.f32.gmra.mrb[0].mxu0 %v1008
      %v1109 = vpop.f32.mrb[0].mxu0
      %v1110 = vadd.f32 0.0, %v1109
      %v1111 = vpop.f32.mrb[0].mxu0
      %1112 = vmatprep.mubr.f32.mxu0 0.0
      %1113 = vmatmul.mubr.f32.gmra.mrb[0].mxu0 %v1011
      %v1114 = vpop.f32.mrb[0].mxu0
      %v1115 = vadd.f32 0.0, %v1114
      %v1116 = vpop.f32.mrb[0].mxu0
      %1117 = vdwg.mxu0
      %vm1118 = vcmp.ge.s32.totalorder %v682, 8
      %vm1119 = vcmp.lt.s32.totalorder %v682, 16
      %vm1120 = vmand %vm1118, %vm1119
      %v1121 = vsel %vm1120, 1.0, 0.0
      %v1122 = vmul.f32 %v499, %v1121
      %v1123 = vmul.f32 %v504, %v1121
      %v1124 = vmul.f32 %v509, %v1121
      %v1125 = vmul.f32 %v514, %v1121
      %v1126 = vmul.f32 %v519, %v1121
      %v1127 = vmul.f32 %v524, %v1121
      %v1128 = vmul.f32 %v529, %v1121
      %v1129 = vmul.f32 %v534, %v1121
      %v1131 = vsel %vm407, %v1122, 0
      %v1134 = vsel %vm407, %v1123, 0
      %v1137 = vsel %vm407, %v1124, 0
      %v1140 = vsel %vm407, %v1125, 0
      %v1143 = vsel %vm407, %v1126, 0
      %v1146 = vsel %vm407, %v1127, 0
      %v1149 = vsel %vm407, %v1128, 0
      %v1152 = vsel %vm407, %v1129, 0
      %1154 = vmatprep.subr.mxu0 0.0
      %1155 = vmatpush1.xpose.msra.mxu0 %v720
      %1156 = vmatprep.subr.mxu0 0.0
      %1157 = vmatpush1.xpose.msra.mxu0 %v723
      %1158 = vmatprep.subr.mxu0 0.0
      %1159 = vmatpush1.xpose.msra.mxu0 %v726
      %1160 = vmatprep.subr.mxu0 0.0
      %1161 = vmatpush1.xpose.msra.mxu0 %v729
      %1162 = vmatprep.subr.mxu0 0.0
      %1163 = vmatpush1.xpose.msra.mxu0 %v732
      %1164 = vmatprep.subr.mxu0 0.0
      %1165 = vmatpush1.xpose.msra.mxu0 %v735
      %1166 = vmatprep.subr.mxu0 0.0
      %1167 = vmatpush1.xpose.msra.mxu0 %v738
      %1168 = vmatprep.subr.mxu0 0.0
      %1169 = vmatpush1.xpose.msra.mxu0 %v741
      %1170 = vmatprep.subr.mxu0 0.0
      %1171 = vmatpush1.xpose.msra.mxu0 0.0
      %1172 = vmatprep.subr.mxu0 0.0
      %1173 = vmatpush1.xpose.msra.mxu0 0.0
      %1174 = vmatprep.subr.mxu0 0.0
      %1175 = vmatpush1.xpose.msra.mxu0 0.0
      %1176 = vmatprep.subr.mxu0 0.0
      %1177 = vmatpush1.xpose.msra.mxu0 0.0
      %1178 = vmatprep.subr.mxu0 0.0
      %1179 = vmatpush1.xpose.msra.mxu0 0.0
      %1180 = vmatprep.subr.mxu0 0.0
      %1181 = vmatpush1.xpose.msra.mxu0 0.0
      %1182 = vmatprep.subr.mxu0 0.0
      %1183 = vmatpush1.xpose.msra.mxu0 0.0
      %1184 = vmatprep.subr.mxu0 0.0
      %1185 = vmatpush1.xpose.msra.mxu0 0.0
      %1186 = vmatprep.subr.mxu0 0.0
      %1187 = vmatpush1.xpose.msra.mxu0 0.0
      %1188 = vmatprep.subr.mxu0 0.0
      %1189 = vmatpush1.xpose.msra.mxu0 0.0
      %1190 = vmatprep.subr.mxu0 0.0
      %1191 = vmatpush1.xpose.msra.mxu0 0.0
      %1192 = vmatprep.subr.mxu0 0.0
      %1193 = vmatpush1.xpose.msra.mxu0 0.0
      %1194 = vmatprep.subr.mxu0 0.0
      %1195 = vmatpush1.xpose.msra.mxu0 0.0
      %1196 = vmatprep.subr.mxu0 0.0
      %1197 = vmatpush1.xpose.msra.mxu0 0.0
      %1198 = vmatprep.subr.mxu0 0.0
      %1199 = vmatpush1.xpose.msra.mxu0 0.0
      %1200 = vmatprep.subr.mxu0 0.0
      %1201 = vmatpush1.xpose.msra.mxu0 0.0
      %1202 = vmatprep.subr.mxu0 0.0
      %1203 = vmatpush1.xpose.msra.mxu0 0.0
      %1204 = vmatprep.subr.mxu0 0.0
      %1205 = vmatpush1.xpose.msra.mxu0 0.0
      %1206 = vmatprep.subr.mxu0 0.0
      %1207 = vmatpush1.xpose.msra.mxu0 0.0
      %1208 = vmatprep.subr.mxu0 0.0
      %1209 = vmatpush1.xpose.msra.mxu0 0.0
      %1210 = vmatprep.subr.mxu0 0.0
      %1211 = vmatpush1.xpose.msra.mxu0 0.0
      %1212 = vmatprep.subr.mxu0 0.0
      %1213 = vmatpush1.xpose.msra.mxu0 0.0
      %1214 = vmatprep.subr.mxu0 0.0
      %1215 = vmatpush1.xpose.msra.mxu0 0.0
      %1216 = vmatprep.subr.mxu0 0.0
      %1217 = vmatpush1.xpose.msra.mxu0 0.0
      %1218 = vmatprep.mubr.f32.mxu0 0.0
      %1219 = vmatmul.mubr.f32.gmra.mrb[0].mxu0 %v1131
      %v1220 = vpop.f32.mrb[0].mxu0
      %v1221 = vadd.f32 0.0, %v1220
      %v1222 = vpop.f32.mrb[0].mxu0
      %1223 = vmatprep.mubr.f32.mxu0 0.0
      %1224 = vmatmul.mubr.f32.gmra.mrb[0].mxu0 %v1134
      %v1225 = vpop.f32.mrb[0].mxu0
      %v1226 = vadd.f32 0.0, %v1225
      %v1227 = vpop.f32.mrb[0].mxu0
      %1228 = vmatprep.mubr.f32.mxu0 0.0
      %1229 = vmatmul.mubr.f32.gmra.mrb[0].mxu0 %v1137
      %v1230 = vpop.f32.mrb[0].mxu0
      %v1231 = vadd.f32 0.0, %v1230
      %v1232 = vpop.f32.mrb[0].mxu0
      %1233 = vmatprep.mubr.f32.mxu0 0.0
      %1234 = vmatmul.mubr.f32.gmra.mrb[0].mxu0 %v1140
      %v1235 = vpop.f32.mrb[0].mxu0
      %v1236 = vadd.f32 0.0, %v1235
      %v1237 = vpop.f32.mrb[0].mxu0
      %1238 = vmatprep.mubr.f32.mxu0 0.0
      %1239 = vmatmul.mubr.f32.gmra.mrb[0].mxu0 %v1143
      %v1240 = vpop.f32.mrb[0].mxu0
      %v1241 = vadd.f32 0.0, %v1240
      %v1242 = vpop.f32.mrb[0].mxu0
      %1243 = vmatprep.mubr.f32.mxu0 0.0
      %1244 = vmatmul.mubr.f32.gmra.mrb[0].mxu0 %v1146
      %v1245 = vpop.f32.mrb[0].mxu0
      %v1246 = vadd.f32 0.0, %v1245
      %v1247 = vpop.f32.mrb[0].mxu0
      %1248 = vmatprep.mubr.f32.mxu0 0.0
      %1249 = vmatmul.mubr.f32.gmra.mrb[0].mxu0 %v1149
      %v1250 = vpop.f32.mrb[0].mxu0
      %v1251 = vadd.f32 0.0, %v1250
      %v1252 = vpop.f32.mrb[0].mxu0
      %1253 = vmatprep.mubr.f32.mxu0 0.0
      %1254 = vmatmul.mubr.f32.gmra.mrb[0].mxu0 %v1152
      %v1255 = vpop.f32.mrb[0].mxu0
      %v1256 = vadd.f32 0.0, %v1255
      %v1257 = vpop.f32.mrb[0].mxu0
      %1258 = vdwg.mxu0
      %v1259 = vmul.f32 %v1221, 0.35355338
      %v1260 = vmul.f32 %v1226, 0.35355338
      %v1261 = vmul.f32 %v1231, 0.35355338
      %v1262 = vmul.f32 %v1236, 0.35355338
      %v1263 = vmul.f32 %v1241, 0.35355338
      %v1264 = vmul.f32 %v1246, 0.35355338
      %v1265 = vmul.f32 %v1251, 0.35355338
      %v1266 = vmul.f32 %v1256, 0.35355338
      %v1267 = vsel %vm856, %v1259, -inf
      %1268 = vmax.xlane.f32.xlu0 %v1267
      %v1269 = vpop.xlane.xlu0 %1268
      %v1270 = vsel %vm856, %v1260, -inf
      %1271 = vmax.xlane.f32.xlu0 %v1270
      %v1272 = vpop.xlane.xlu0 %1271
      %v1273 = vsel %vm856, %v1261, -inf
      %1274 = vmax.xlane.f32.xlu0 %v1273
      %v1275 = vpop.xlane.xlu0 %1274
      %v1276 = vsel %vm856, %v1262, -inf
      %1277 = vmax.xlane.f32.xlu0 %v1276
      %v1278 = vpop.xlane.xlu0 %1277
      %v1279 = vsel %vm856, %v1263, -inf
      %1280 = vmax.xlane.f32.xlu0 %v1279
      %v1281 = vpop.xlane.xlu0 %1280
      %v1282 = vsel %vm856, %v1264, -inf
      %1283 = vmax.xlane.f32.xlu0 %v1282
      %v1284 = vpop.xlane.xlu0 %1283
      %v1285 = vsel %vm856, %v1265, -inf
      %1286 = vmax.xlane.f32.xlu0 %v1285
      %v1287 = vpop.xlane.xlu0 %1286
      %v1288 = vsel %vm856, %v1266, -inf
      %1289 = vmax.xlane.f32.xlu0 %v1288
      %v1290 = vpop.xlane.xlu0 %1289
      %v1291 = vsub.f32 %v1259, %v1269
      %v1292 = vsub.f32 %v1260, %v1272
      %v1293 = vsub.f32 %v1261, %v1275
      %v1294 = vsub.f32 %v1262, %v1278
      %v1295 = vsub.f32 %v1263, %v1281
      %v1296 = vsub.f32 %v1264, %v1284
      %v1297 = vsub.f32 %v1265, %v1287
      %v1298 = vsub.f32 %v1266, %v1290
      %v1299 = vmul.f32 %v1291, 1.442695
      %v1300 = vpow.pop %v1299
      %v1301 = vmul.f32 %v1292, 1.442695
      %v1302 = vpow.pop %v1301
      %v1303 = vmul.f32 %v1293, 1.442695
      %v1304 = vpow.pop %v1303
      %v1305 = vmul.f32 %v1294, 1.442695
      %v1306 = vpow.pop %v1305
      %v1307 = vmul.f32 %v1295, 1.442695
      %v1308 = vpow.pop %v1307
      %v1309 = vmul.f32 %v1296, 1.442695
      %v1310 = vpow.pop %v1309
      %v1311 = vmul.f32 %v1297, 1.442695
      %v1312 = vpow.pop %v1311
      %v1313 = vmul.f32 %v1298, 1.442695
      %v1314 = vpow.pop %v1313
      %v1315 = vsel %vm856, %v1300, 0.0
      %1316 = vadd.xlane.f32.xlu0 %v1315
      %v1317 = vpop.xlane.xlu0 %1316
      %v1318 = vsel %vm856, %v1302, 0.0
      %1319 = vadd.xlane.f32.xlu0 %v1318
      %v1320 = vpop.xlane.xlu0 %1319
      %v1321 = vsel %vm856, %v1304, 0.0
      %1322 = vadd.xlane.f32.xlu0 %v1321
      %v1323 = vpop.xlane.xlu0 %1322
      %v1324 = vsel %vm856, %v1306, 0.0
      %1325 = vadd.xlane.f32.xlu0 %v1324
      %v1326 = vpop.xlane.xlu0 %1325
      %v1327 = vsel %vm856, %v1308, 0.0
      %1328 = vadd.xlane.f32.xlu0 %v1327
      %v1329 = vpop.xlane.xlu0 %1328
      %v1330 = vsel %vm856, %v1310, 0.0
      %1331 = vadd.xlane.f32.xlu0 %v1330
      %v1332 = vpop.xlane.xlu0 %1331
      %v1333 = vsel %vm856, %v1312, 0.0
      %1334 = vadd.xlane.f32.xlu0 %v1333
      %v1335 = vpop.xlane.xlu0 %1334
      %v1336 = vsel %vm856, %v1314, 0.0
      %1337 = vadd.xlane.f32.xlu0 %v1336
      %v1338 = vpop.xlane.xlu0 %1337
      %v1339 = vrcp.pop %v1317
      %v1340 = vmul.f32 %v1300, %v1339
      %v1341 = vrcp.pop %v1320
      %v1342 = vmul.f32 %v1302, %v1341
      %v1343 = vrcp.pop %v1323
      %v1344 = vmul.f32 %v1304, %v1343
      %v1345 = vrcp.pop %v1326
      %v1346 = vmul.f32 %v1306, %v1345
      %v1347 = vrcp.pop %v1329
      %v1348 = vmul.f32 %v1308, %v1347
      %v1349 = vrcp.pop %v1332
      %v1350 = vmul.f32 %v1310, %v1349
      %v1351 = vrcp.pop %v1335
      %v1352 = vmul.f32 %v1312, %v1351
      %v1353 = vrcp.pop %v1338
      %v1354 = vmul.f32 %v1314, %v1353
      %1356 = vrot.lane.b32.xlu0 %v1121, 32
      %v1357 = vpop.permute.xlu0 %1356
      %v1359 = vmul.f32 %v639, %v1357
      %v1360 = vmul.f32 %v644, %v1357
      %v1361 = vmul.f32 %v649, %v1357
      %v1362 = vmul.f32 %v654, %v1357
      %v1363 = vmul.f32 %v659, %v1357
      %v1364 = vmul.f32 %v664, %v1357
      %v1365 = vmul.f32 %v669, %v1357
      %v1366 = vmul.f32 %v674, %v1357
      %1375 = vrot.lane.b32.xlu0 %v1359, 96
      %v1376 = vpop.permute.xlu0 %1375
      %1377 = vrot.lane.b32.xlu0 %v1360, 96
      %v1378 = vpop.permute.xlu0 %1377
      %1379 = vrot.lane.b32.xlu0 %v1361, 96
      %v1380 = vpop.permute.xlu0 %1379
      %1381 = vrot.lane.b32.xlu0 %v1362, 96
      %v1382 = vpop.permute.xlu0 %1381
      %1383 = vrot.lane.b32.xlu0 %v1363, 96
      %v1384 = vpop.permute.xlu0 %1383
      %1385 = vrot.lane.b32.xlu0 %v1364, 96
      %v1386 = vpop.permute.xlu0 %1385
      %1387 = vrot.lane.b32.xlu0 %v1365, 96
      %v1388 = vpop.permute.xlu0 %1387
      %1389 = vrot.lane.b32.xlu0 %v1366, 96
      %v1390 = vpop.permute.xlu0 %1389
      %v1400 = vsel %vm856, %v1340, 0
      %v1403 = vsel %vm856, %v1342, 0
      %v1406 = vsel %vm856, %v1344, 0
      %v1409 = vsel %vm856, %v1346, 0
      %v1412 = vsel %vm856, %v1348, 0
      %v1415 = vsel %vm856, %v1350, 0
      %v1418 = vsel %vm856, %v1352, 0
      %v1421 = vsel %vm856, %v1354, 0
      %1423 = vmatprep.subr.mxu0 0.0
      %1424 = vmatpush1.msra.mxu0 %v1376
      %1425 = vmatprep.subr.mxu0 0.0
      %1426 = vmatpush1.msra.mxu0 %v1378
      %1427 = vmatprep.subr.mxu0 0.0
      %1428 = vmatpush1.msra.mxu0 %v1380
      %1429 = vmatprep.subr.mxu0 0.0
      %1430 = vmatpush1.msra.mxu0 %v1382
      %1431 = vmatprep.subr.mxu0 0.0
      %1432 = vmatpush1.msra.mxu0 %v1384
      %1433 = vmatprep.subr.mxu0 0.0
      %1434 = vmatpush1.msra.mxu0 %v1386
      %1435 = vmatprep.subr.mxu0 0.0
      %1436 = vmatpush1.msra.mxu0 %v1388
      %1437 = vmatprep.subr.mxu0 0.0
      %1438 = vmatpush1.msra.mxu0 %v1390
      %1439 = vmatprep.subr.mxu0 0.0
      %1440 = vmatpush1.msra.mxu0 0.0
      %1441 = vmatprep.subr.mxu0 0.0
      %1442 = vmatpush1.msra.mxu0 0.0
      %1443 = vmatprep.subr.mxu0 0.0
      %1444 = vmatpush1.msra.mxu0 0.0
      %1445 = vmatprep.subr.mxu0 0.0
      %1446 = vmatpush1.msra.mxu0 0.0
      %1447 = vmatprep.subr.mxu0 0.0
      %1448 = vmatpush1.msra.mxu0 0.0
      %1449 = vmatprep.subr.mxu0 0.0
      %1450 = vmatpush1.msra.mxu0 0.0
      %1451 = vmatprep.subr.mxu0 0.0
      %1452 = vmatpush1.msra.mxu0 0.0
      %1453 = vmatprep.subr.mxu0 0.0
      %1454 = vmatpush1.msra.mxu0 0.0
      %1455 = vmatprep.subr.mxu0 0.0
      %1456 = vmatpush1.msra.mxu0 0.0
      %1457 = vmatprep.subr.mxu0 0.0
      %1458 = vmatpush1.msra.mxu0 0.0
      %1459 = vmatprep.subr.mxu0 0.0
      %1460 = vmatpush1.msra.mxu0 0.0
      %1461 = vmatprep.subr.mxu0 0.0
      %1462 = vmatpush1.msra.mxu0 0.0
      %1463 = vmatprep.subr.mxu0 0.0
      %1464 = vmatpush1.msra.mxu0 0.0
      %1465 = vmatprep.subr.mxu0 0.0
      %1466 = vmatpush1.msra.mxu0 0.0
      %1467 = vmatprep.subr.mxu0 0.0
      %1468 = vmatpush1.msra.mxu0 0.0
      %1469 = vmatprep.subr.mxu0 0.0
      %1470 = vmatpush1.msra.mxu0 0.0
      %1471 = vmatprep.subr.mxu0 0.0
      %1472 = vmatpush1.msra.mxu0 0.0
      %1473 = vmatprep.subr.mxu0 0.0
      %1474 = vmatpush1.msra.mxu0 0.0
      %1475 = vmatprep.subr.mxu0 0.0
      %1476 = vmatpush1.msra.mxu0 0.0
      %1477 = vmatprep.subr.mxu0 0.0
      %1478 = vmatpush1.msra.mxu0 0.0
      %1479 = vmatprep.subr.mxu0 0.0
      %1480 = vmatpush1.msra.mxu0 0.0
      %1481 = vmatprep.subr.mxu0 0.0
      %1482 = vmatpush1.msra.mxu0 0.0
      %1483 = vmatprep.subr.mxu0 0.0
      %1484 = vmatpush1.msra.mxu0 0.0
      %1485 = vmatprep.subr.mxu0 0.0
      %1486 = vmatpush1.msra.mxu0 0.0
      %1487 = vmatprep.mubr.f32.mxu0 0.0
      %1488 = vmatmul.mubr.f32.gmra.mrb[0].mxu0 %v1400
      %v1489 = vpop.f32.mrb[0].mxu0
      %v1490 = vadd.f32 0.0, %v1489
      %v1491 = vpop.f32.mrb[0].mxu0
      %1492 = vmatprep.mubr.f32.mxu0 0.0
      %1493 = vmatmul.mubr.f32.gmra.mrb[0].mxu0 %v1403
      %v1494 = vpop.f32.mrb[0].mxu0
      %v1495 = vadd.f32 0.0, %v1494
      %v1496 = vpop.f32.mrb[0].mxu0
      %1497 = vmatprep.mubr.f32.mxu0 0.0
      %1498 = vmatmul.mubr.f32.gmra.mrb[0].mxu0 %v1406
      %v1499 = vpop.f32.mrb[0].mxu0
      %v1500 = vadd.f32 0.0, %v1499
      %v1501 = vpop.f32.mrb[0].mxu0
      %1502 = vmatprep.mubr.f32.mxu0 0.0
      %1503 = vmatmul.mubr.f32.gmra.mrb[0].mxu0 %v1409
      %v1504 = vpop.f32.mrb[0].mxu0
      %v1505 = vadd.f32 0.0, %v1504
      %v1506 = vpop.f32.mrb[0].mxu0
      %1507 = vmatprep.mubr.f32.mxu0 0.0
      %1508 = vmatmul.mubr.f32.gmra.mrb[0].mxu0 %v1412
      %v1509 = vpop.f32.mrb[0].mxu0
      %v1510 = vadd.f32 0.0, %v1509
      %v1511 = vpop.f32.mrb[0].mxu0
      %1512 = vmatprep.mubr.f32.mxu0 0.0
      %1513 = vmatmul.mubr.f32.gmra.mrb[0].mxu0 %v1415
      %v1514 = vpop.f32.mrb[0].mxu0
      %v1515 = vadd.f32 0.0, %v1514
      %v1516 = vpop.f32.mrb[0].mxu0
      %1517 = vmatprep.mubr.f32.mxu0 0.0
      %1518 = vmatmul.mubr.f32.gmra.mrb[0].mxu0 %v1418
      %v1519 = vpop.f32.mrb[0].mxu0
      %v1520 = vadd.f32 0.0, %v1519
      %v1521 = vpop.f32.mrb[0].mxu0
      %1522 = vmatprep.mubr.f32.mxu0 0.0
      %1523 = vmatmul.mubr.f32.gmra.mrb[0].mxu0 %v1421
      %v1524 = vpop.f32.mrb[0].mxu0
      %v1525 = vadd.f32 0.0, %v1524
      %v1526 = vpop.f32.mrb[0].mxu0
      %1527 = vdwg.mxu0
      %v1529 = vsel %vm407, %v1490, 0
      %v1532 = vsel %vm407, %v1495, 0
      %v1535 = vsel %vm407, %v1500, 0
      %v1538 = vsel %vm407, %v1505, 0
      %v1541 = vsel %vm407, %v1510, 0
      %v1544 = vsel %vm407, %v1515, 0
      %v1547 = vsel %vm407, %v1520, 0
      %v1550 = vsel %vm407, %v1525, 0
      %1552 = vmatprep.subr.mxu0 0.0
      %1553 = vmatpush1.msra.mxu0 %v677
      %1554 = vmatprep.subr.mxu0 0.0
      %1555 = vmatpush1.msra.mxu0 %v678
      %1556 = vmatprep.subr.mxu0 0.0
      %1557 = vmatpush1.msra.mxu0 %v679
      %1558 = vmatprep.subr.mxu0 0.0
      %1559 = vmatpush1.msra.mxu0 %v680
      %1560 = vmatprep.subr.mxu0 0.0
      %1561 = vmatpush1.msra.mxu0 0.0
      %1562 = vmatprep.subr.mxu0 0.0
      %1563 = vmatpush1.msra.mxu0 0.0
      %1564 = vmatprep.subr.mxu0 0.0
      %1565 = vmatpush1.msra.mxu0 0.0
      %1566 = vmatprep.subr.mxu0 0.0
      %1567 = vmatpush1.msra.mxu0 0.0
      %1568 = vmatprep.subr.mxu0 0.0
      %1569 = vmatpush1.msra.mxu0 0.0
      %1570 = vmatprep.subr.mxu0 0.0
      %1571 = vmatpush1.msra.mxu0 0.0
      %1572 = vmatprep.subr.mxu0 0.0
      %1573 = vmatpush1.msra.mxu0 0.0
      %1574 = vmatprep.subr.mxu0 0.0
      %1575 = vmatpush1.msra.mxu0 0.0
      %1576 = vmatprep.subr.mxu0 0.0
      %1577 = vmatpush1.msra.mxu0 0.0
      %1578 = vmatprep.subr.mxu0 0.0
      %1579 = vmatpush1.msra.mxu0 0.0
      %1580 = vmatprep.subr.mxu0 0.0
      %1581 = vmatpush1.msra.mxu0 0.0
      %1582 = vmatprep.subr.mxu0 0.0
      %1583 = vmatpush1.msra.mxu0 0.0
      %1584 = vmatprep.subr.mxu0 0.0
      %1585 = vmatpush1.msra.mxu0 0.0
      %1586 = vmatprep.subr.mxu0 0.0
      %1587 = vmatpush1.msra.mxu0 0.0
      %1588 = vmatprep.subr.mxu0 0.0
      %1589 = vmatpush1.msra.mxu0 0.0
      %1590 = vmatprep.subr.mxu0 0.0
      %1591 = vmatpush1.msra.mxu0 0.0
      %1592 = vmatprep.subr.mxu0 0.0
      %1593 = vmatpush1.msra.mxu0 0.0
      %1594 = vmatprep.subr.mxu0 0.0
      %1595 = vmatpush1.msra.mxu0 0.0
      %1596 = vmatprep.subr.mxu0 0.0
      %1597 = vmatpush1.msra.mxu0 0.0
      %1598 = vmatprep.subr.mxu0 0.0
      %1599 = vmatpush1.msra.mxu0 0.0
      %1600 = vmatprep.subr.mxu0 0.0
      %1601 = vmatpush1.msra.mxu0 0.0
      %1602 = vmatprep.subr.mxu0 0.0
      %1603 = vmatpush1.msra.mxu0 0.0
      %1604 = vmatprep.subr.mxu0 0.0
      %1605 = vmatpush1.msra.mxu0 0.0
      %1606 = vmatprep.subr.mxu0 0.0
      %1607 = vmatpush1.msra.mxu0 0.0
      %1608 = vmatprep.subr.mxu0 0.0
      %1609 = vmatpush1.msra.mxu0 0.0
      %1610 = vmatprep.subr.mxu0 0.0
      %1611 = vmatpush1.msra.mxu0 0.0
      %1612 = vmatprep.subr.mxu0 0.0
      %1613 = vmatpush1.msra.mxu0 0.0
      %1614 = vmatprep.subr.mxu0 0.0
      %1615 = vmatpush1.msra.mxu0 0.0
      %1616 = vmatprep.mubr.f32.mxu0 0.0
      %1617 = vmatmul.mubr.f32.gmra.mrb[0].mxu0 %v1529
      %v1618 = vpop.f32.mrb[0].mxu0
      %v1619 = vadd.f32 0.0, %v1618
      %v1620 = vpop.f32.mrb[0].mxu0
      %1621 = vmatprep.mubr.f32.mxu0 0.0
      %1622 = vmatmul.mubr.f32.gmra.mrb[0].mxu0 %v1532
      %v1623 = vpop.f32.mrb[0].mxu0
      %v1624 = vadd.f32 0.0, %v1623
      %v1625 = vpop.f32.mrb[0].mxu0
      %1626 = vmatprep.mubr.f32.mxu0 0.0
      %1627 = vmatmul.mubr.f32.gmra.mrb[0].mxu0 %v1535
      %v1628 = vpop.f32.mrb[0].mxu0
      %v1629 = vadd.f32 0.0, %v1628
      %v1630 = vpop.f32.mrb[0].mxu0
      %1631 = vmatprep.mubr.f32.mxu0 0.0
      %1632 = vmatmul.mubr.f32.gmra.mrb[0].mxu0 %v1538
      %v1633 = vpop.f32.mrb[0].mxu0
      %v1634 = vadd.f32 0.0, %v1633
      %v1635 = vpop.f32.mrb[0].mxu0
      %1636 = vmatprep.mubr.f32.mxu0 0.0
      %1637 = vmatmul.mubr.f32.gmra.mrb[0].mxu0 %v1541
      %v1638 = vpop.f32.mrb[0].mxu0
      %v1639 = vadd.f32 0.0, %v1638
      %v1640 = vpop.f32.mrb[0].mxu0
      %1641 = vmatprep.mubr.f32.mxu0 0.0
      %1642 = vmatmul.mubr.f32.gmra.mrb[0].mxu0 %v1544
      %v1643 = vpop.f32.mrb[0].mxu0
      %v1644 = vadd.f32 0.0, %v1643
      %v1645 = vpop.f32.mrb[0].mxu0
      %1646 = vmatprep.mubr.f32.mxu0 0.0
      %1647 = vmatmul.mubr.f32.gmra.mrb[0].mxu0 %v1547
      %v1648 = vpop.f32.mrb[0].mxu0
      %v1649 = vadd.f32 0.0, %v1648
      %v1650 = vpop.f32.mrb[0].mxu0
      %1651 = vmatprep.mubr.f32.mxu0 0.0
      %1652 = vmatmul.mubr.f32.gmra.mrb[0].mxu0 %v1550
      %v1653 = vpop.f32.mrb[0].mxu0
      %v1654 = vadd.f32 0.0, %v1653
      %v1655 = vpop.f32.mrb[0].mxu0
      %1656 = vdwg.mxu0
      %v1658 = vsel %vm407, %v1080, 0
      %v1661 = vsel %vm407, %v1085, 0
      %v1664 = vsel %vm407, %v1090, 0
      %v1667 = vsel %vm407, %v1095, 0
      %v1670 = vsel %vm407, %v1100, 0
      %v1673 = vsel %vm407, %v1105, 0
      %v1676 = vsel %vm407, %v1110, 0
      %v1679 = vsel %vm407, %v1115, 0
      %1681 = vmatprep.subr.mxu0 0.0
      %1682 = vmatpush1.msra.mxu0 %v677
      %1683 = vmatprep.subr.mxu0 0.0
      %1684 = vmatpush1.msra.mxu0 %v678
      %1685 = vmatprep.subr.mxu0 0.0
      %1686 = vmatpush1.msra.mxu0 %v679
      %1687 = vmatprep.subr.mxu0 0.0
      %1688 = vmatpush1.msra.mxu0 %v680
      %1689 = vmatprep.subr.mxu0 0.0
      %1690 = vmatpush1.msra.mxu0 0.0
      %1691 = vmatprep.subr.mxu0 0.0
      %1692 = vmatpush1.msra.mxu0 0.0
      %1693 = vmatprep.subr.mxu0 0.0
      %1694 = vmatpush1.msra.mxu0 0.0
      %1695 = vmatprep.subr.mxu0 0.0
      %1696 = vmatpush1.msra.mxu0 0.0
      %1697 = vmatprep.subr.mxu0 0.0
      %1698 = vmatpush1.msra.mxu0 0.0
      %1699 = vmatprep.subr.mxu0 0.0
      %1700 = vmatpush1.msra.mxu0 0.0
      %1701 = vmatprep.subr.mxu0 0.0
      %1702 = vmatpush1.msra.mxu0 0.0
      %1703 = vmatprep.subr.mxu0 0.0
      %1704 = vmatpush1.msra.mxu0 0.0
      %1705 = vmatprep.subr.mxu0 0.0
      %1706 = vmatpush1.msra.mxu0 0.0
      %1707 = vmatprep.subr.mxu0 0.0
      %1708 = vmatpush1.msra.mxu0 0.0
      %1709 = vmatprep.subr.mxu0 0.0
      %1710 = vmatpush1.msra.mxu0 0.0
      %1711 = vmatprep.subr.mxu0 0.0
      %1712 = vmatpush1.msra.mxu0 0.0
      %1713 = vmatprep.subr.mxu0 0.0
      %1714 = vmatpush1.msra.mxu0 0.0
      %1715 = vmatprep.subr.mxu0 0.0
      %1716 = vmatpush1.msra.mxu0 0.0
      %1717 = vmatprep.subr.mxu0 0.0
      %1718 = vmatpush1.msra.mxu0 0.0
      %1719 = vmatprep.subr.mxu0 0.0
      %1720 = vmatpush1.msra.mxu0 0.0
      %1721 = vmatprep.subr.mxu0 0.0
      %1722 = vmatpush1.msra.mxu0 0.0
      %1723 = vmatprep.subr.mxu0 0.0
      %1724 = vmatpush1.msra.mxu0 0.0
      %1725 = vmatprep.subr.mxu0 0.0
      %1726 = vmatpush1.msra.mxu0 0.0
      %1727 = vmatprep.subr.mxu0 0.0
      %1728 = vmatpush1.msra.mxu0 0.0
      %1729 = vmatprep.subr.mxu0 0.0
      %1730 = vmatpush1.msra.mxu0 0.0
      %1731 = vmatprep.subr.mxu0 0.0
      %1732 = vmatpush1.msra.mxu0 0.0
      %1733 = vmatprep.subr.mxu0 0.0
      %1734 = vmatpush1.msra.mxu0 0.0
      %1735 = vmatprep.subr.mxu0 0.0
      %1736 = vmatpush1.msra.mxu0 0.0
      %1737 = vmatprep.subr.mxu0 0.0
      %1738 = vmatpush1.msra.mxu0 0.0
      %1739 = vmatprep.subr.mxu0 0.0
      %1740 = vmatpush1.msra.mxu0 0.0
      %1741 = vmatprep.subr.mxu0 0.0
      %1742 = vmatpush1.msra.mxu0 0.0
      %1743 = vmatprep.subr.mxu0 0.0
      %1744 = vmatpush1.msra.mxu0 0.0
      %1745 = vmatprep.mubr.f32.mxu0 0.0
      %1746 = vmatmul.mubr.f32.gmra.mrb[0].mxu0 %v1658
      %v1747 = vpop.f32.mrb[0].mxu0
      %v1748 = vadd.f32 %v1619, %v1747
      %v1749 = vpop.f32.mrb[0].mxu0
      %1750 = vmatprep.mubr.f32.mxu0 0.0
      %1751 = vmatmul.mubr.f32.gmra.mrb[0].mxu0 %v1661
      %v1752 = vpop.f32.mrb[0].mxu0
      %v1753 = vadd.f32 %v1624, %v1752
      %v1754 = vpop.f32.mrb[0].mxu0
      %1755 = vmatprep.mubr.f32.mxu0 0.0
      %1756 = vmatmul.mubr.f32.gmra.mrb[0].mxu0 %v1664
      %v1757 = vpop.f32.mrb[0].mxu0
      %v1758 = vadd.f32 %v1629, %v1757
      %v1759 = vpop.f32.mrb[0].mxu0
      %1760 = vmatprep.mubr.f32.mxu0 0.0
      %1761 = vmatmul.mubr.f32.gmra.mrb[0].mxu0 %v1667
      %v1762 = vpop.f32.mrb[0].mxu0
      %v1763 = vadd.f32 %v1634, %v1762
      %v1764 = vpop.f32.mrb[0].mxu0
      %1765 = vmatprep.mubr.f32.mxu0 0.0
      %1766 = vmatmul.mubr.f32.gmra.mrb[0].mxu0 %v1670
      %v1767 = vpop.f32.mrb[0].mxu0
      %v1768 = vadd.f32 %v1639, %v1767
      %v1769 = vpop.f32.mrb[0].mxu0
      %1770 = vmatprep.mubr.f32.mxu0 0.0
      %1771 = vmatmul.mubr.f32.gmra.mrb[0].mxu0 %v1673
      %v1772 = vpop.f32.mrb[0].mxu0
      %v1773 = vadd.f32 %v1644, %v1772
      %v1774 = vpop.f32.mrb[0].mxu0
      %1775 = vmatprep.mubr.f32.mxu0 0.0
      %1776 = vmatmul.mubr.f32.gmra.mrb[0].mxu0 %v1676
      %v1777 = vpop.f32.mrb[0].mxu0
      %v1778 = vadd.f32 %v1649, %v1777
      %v1779 = vpop.f32.mrb[0].mxu0
      %1780 = vmatprep.mubr.f32.mxu0 0.0
      %1781 = vmatmul.mubr.f32.gmra.mrb[0].mxu0 %v1679
      %v1782 = vpop.f32.mrb[0].mxu0
      %v1783 = vadd.f32 %v1654, %v1782
      %v1784 = vpop.f32.mrb[0].mxu0
      %1785 = vdwg.mxu0
      %vm1786 = vcmp.ge.s32.totalorder %v682, 16
      %vm1787 = vcmp.lt.s32.totalorder %v682, 24
      %vm1788 = vmand %vm1786, %vm1787
      %v1789 = vsel %vm1788, 1.0, 0.0
      %v1790 = vmul.f32 %v499, %v1789
      %v1791 = vmul.f32 %v504, %v1789
      %v1792 = vmul.f32 %v509, %v1789
      %v1793 = vmul.f32 %v514, %v1789
      %v1794 = vmul.f32 %v519, %v1789
      %v1795 = vmul.f32 %v524, %v1789
      %v1796 = vmul.f32 %v529, %v1789
      %v1797 = vmul.f32 %v534, %v1789
      %v1799 = vsel %vm407, %v1790, 0
      %v1802 = vsel %vm407, %v1791, 0
      %v1805 = vsel %vm407, %v1792, 0
      %v1808 = vsel %vm407, %v1793, 0
      %v1811 = vsel %vm407, %v1794, 0
      %v1814 = vsel %vm407, %v1795, 0
      %v1817 = vsel %vm407, %v1796, 0
      %v1820 = vsel %vm407, %v1797, 0
      %1822 = vmatprep.subr.mxu0 0.0
      %1823 = vmatpush1.xpose.msra.mxu0 %v720
      %1824 = vmatprep.subr.mxu0 0.0
      %1825 = vmatpush1.xpose.msra.mxu0 %v723
      %1826 = vmatprep.subr.mxu0 0.0
      %1827 = vmatpush1.xpose.msra.mxu0 %v726
      %1828 = vmatprep.subr.mxu0 0.0
      %1829 = vmatpush1.xpose.msra.mxu0 %v729
      %1830 = vmatprep.subr.mxu0 0.0
      %1831 = vmatpush1.xpose.msra.mxu0 %v732
      %1832 = vmatprep.subr.mxu0 0.0
      %1833 = vmatpush1.xpose.msra.mxu0 %v735
      %1834 = vmatprep.subr.mxu0 0.0
      %1835 = vmatpush1.xpose.msra.mxu0 %v738
      %1836 = vmatprep.subr.mxu0 0.0
      %1837 = vmatpush1.xpose.msra.mxu0 %v741
      %1838 = vmatprep.subr.mxu0 0.0
      %1839 = vmatpush1.xpose.msra.mxu0 0.0
      %1840 = vmatprep.subr.mxu0 0.0
      %1841 = vmatpush1.xpose.msra.mxu0 0.0
      %1842 = vmatprep.subr.mxu0 0.0
      %1843 = vmatpush1.xpose.msra.mxu0 0.0
      %1844 = vmatprep.subr.mxu0 0.0
      %1845 = vmatpush1.xpose.msra.mxu0 0.0
      %1846 = vmatprep.subr.mxu0 0.0
      %1847 = vmatpush1.xpose.msra.mxu0 0.0
      %1848 = vmatprep.subr.mxu0 0.0
      %1849 = vmatpush1.xpose.msra.mxu0 0.0
      %1850 = vmatprep.subr.mxu0 0.0
      %1851 = vmatpush1.xpose.msra.mxu0 0.0
      %1852 = vmatprep.subr.mxu0 0.0
      %1853 = vmatpush1.xpose.msra.mxu0 0.0
      %1854 = vmatprep.subr.mxu0 0.0
      %1855 = vmatpush1.xpose.msra.mxu0 0.0
      %1856 = vmatprep.subr.mxu0 0.0
      %1857 = vmatpush1.xpose.msra.mxu0 0.0
      %1858 = vmatprep.subr.mxu0 0.0
      %1859 = vmatpush1.xpose.msra.mxu0 0.0
      %1860 = vmatprep.subr.mxu0 0.0
      %1861 = vmatpush1.xpose.msra.mxu0 0.0
      %1862 = vmatprep.subr.mxu0 0.0
      %1863 = vmatpush1.xpose.msra.mxu0 0.0
      %1864 = vmatprep.subr.mxu0 0.0
      %1865 = vmatpush1.xpose.msra.mxu0 0.0
      %1866 = vmatprep.subr.mxu0 0.0
      %1867 = vmatpush1.xpose.msra.mxu0 0.0
      %1868 = vmatprep.subr.mxu0 0.0
      %1869 = vmatpush1.xpose.msra.mxu0 0.0
      %1870 = vmatprep.subr.mxu0 0.0
      %1871 = vmatpush1.xpose.msra.mxu0 0.0
      %1872 = vmatprep.subr.mxu0 0.0
      %1873 = vmatpush1.xpose.msra.mxu0 0.0
      %1874 = vmatprep.subr.mxu0 0.0
      %1875 = vmatpush1.xpose.msra.mxu0 0.0
      %1876 = vmatprep.subr.mxu0 0.0
      %1877 = vmatpush1.xpose.msra.mxu0 0.0
      %1878 = vmatprep.subr.mxu0 0.0
      %1879 = vmatpush1.xpose.msra.mxu0 0.0
      %1880 = vmatprep.subr.mxu0 0.0
      %1881 = vmatpush1.xpose.msra.mxu0 0.0
      %1882 = vmatprep.subr.mxu0 0.0
      %1883 = vmatpush1.xpose.msra.mxu0 0.0
      %1884 = vmatprep.subr.mxu0 0.0
      %1885 = vmatpush1.xpose.msra.mxu0 0.0
      %1886 = vmatprep.mubr.f32.mxu0 0.0
      %1887 = vmatmul.mubr.f32.gmra.mrb[0].mxu0 %v1799
      %v1888 = vpop.f32.mrb[0].mxu0
      %v1889 = vadd.f32 0.0, %v1888
      %v1890 = vpop.f32.mrb[0].mxu0
      %1891 = vmatprep.mubr.f32.mxu0 0.0
      %1892 = vmatmul.mubr.f32.gmra.mrb[0].mxu0 %v1802
      %v1893 = vpop.f32.mrb[0].mxu0
      %v1894 = vadd.f32 0.0, %v1893
      %v1895 = vpop.f32.mrb[0].mxu0
      %1896 = vmatprep.mubr.f32.mxu0 0.0
      %1897 = vmatmul.mubr.f32.gmra.mrb[0].mxu0 %v1805
      %v1898 = vpop.f32.mrb[0].mxu0
      %v1899 = vadd.f32 0.0, %v1898
      %v1900 = vpop.f32.mrb[0].mxu0
      %1901 = vmatprep.mubr.f32.mxu0 0.0
      %1902 = vmatmul.mubr.f32.gmra.mrb[0].mxu0 %v1808
      %v1903 = vpop.f32.mrb[0].mxu0
      %v1904 = vadd.f32 0.0, %v1903
      %v1905 = vpop.f32.mrb[0].mxu0
      %1906 = vmatprep.mubr.f32.mxu0 0.0
      %1907 = vmatmul.mubr.f32.gmra.mrb[0].mxu0 %v1811
      %v1908 = vpop.f32.mrb[0].mxu0
      %v1909 = vadd.f32 0.0, %v1908
      %v1910 = vpop.f32.mrb[0].mxu0
      %1911 = vmatprep.mubr.f32.mxu0 0.0
      %1912 = vmatmul.mubr.f32.gmra.mrb[0].mxu0 %v1814
      %v1913 = vpop.f32.mrb[0].mxu0
      %v1914 = vadd.f32 0.0, %v1913
      %v1915 = vpop.f32.mrb[0].mxu0
      %1916 = vmatprep.mubr.f32.mxu0 0.0
      %1917 = vmatmul.mubr.f32.gmra.mrb[0].mxu0 %v1817
      %v1918 = vpop.f32.mrb[0].mxu0
      %v1919 = vadd.f32 0.0, %v1918
      %v1920 = vpop.f32.mrb[0].mxu0
      %1921 = vmatprep.mubr.f32.mxu0 0.0
      %1922 = vmatmul.mubr.f32.gmra.mrb[0].mxu0 %v1820
      %v1923 = vpop.f32.mrb[0].mxu0
      %v1924 = vadd.f32 0.0, %v1923
      %v1925 = vpop.f32.mrb[0].mxu0
      %1926 = vdwg.mxu0
      %v1927 = vmul.f32 %v1889, 0.35355338
      %v1928 = vmul.f32 %v1894, 0.35355338
      %v1929 = vmul.f32 %v1899, 0.35355338
      %v1930 = vmul.f32 %v1904, 0.35355338
      %v1931 = vmul.f32 %v1909, 0.35355338
      %v1932 = vmul.f32 %v1914, 0.35355338
      %v1933 = vmul.f32 %v1919, 0.35355338
      %v1934 = vmul.f32 %v1924, 0.35355338
      %v1935 = vsel %vm856, %v1927, -inf
      %1936 = vmax.xlane.f32.xlu0 %v1935
      %v1937 = vpop.xlane.xlu0 %1936
      %v1938 = vsel %vm856, %v1928, -inf
      %1939 = vmax.xlane.f32.xlu0 %v1938
      %v1940 = vpop.xlane.xlu0 %1939
      %v1941 = vsel %vm856, %v1929, -inf
      %1942 = vmax.xlane.f32.xlu0 %v1941
      %v1943 = vpop.xlane.xlu0 %1942
      %v1944 = vsel %vm856, %v1930, -inf
      %1945 = vmax.xlane.f32.xlu0 %v1944
      %v1946 = vpop.xlane.xlu0 %1945
      %v1947 = vsel %vm856, %v1931, -inf
      %1948 = vmax.xlane.f32.xlu0 %v1947
      %v1949 = vpop.xlane.xlu0 %1948
      %v1950 = vsel %vm856, %v1932, -inf
      %1951 = vmax.xlane.f32.xlu0 %v1950
      %v1952 = vpop.xlane.xlu0 %1951
      %v1953 = vsel %vm856, %v1933, -inf
      %1954 = vmax.xlane.f32.xlu0 %v1953
      %v1955 = vpop.xlane.xlu0 %1954
      %v1956 = vsel %vm856, %v1934, -inf
      %1957 = vmax.xlane.f32.xlu0 %v1956
      %v1958 = vpop.xlane.xlu0 %1957
      %v1959 = vsub.f32 %v1927, %v1937
      %v1960 = vsub.f32 %v1928, %v1940
      %v1961 = vsub.f32 %v1929, %v1943
      %v1962 = vsub.f32 %v1930, %v1946
      %v1963 = vsub.f32 %v1931, %v1949
      %v1964 = vsub.f32 %v1932, %v1952
      %v1965 = vsub.f32 %v1933, %v1955
      %v1966 = vsub.f32 %v1934, %v1958
      %v1967 = vmul.f32 %v1959, 1.442695
      %v1968 = vpow.pop %v1967
      %v1969 = vmul.f32 %v1960, 1.442695
      %v1970 = vpow.pop %v1969
      %v1971 = vmul.f32 %v1961, 1.442695
      %v1972 = vpow.pop %v1971
      %v1973 = vmul.f32 %v1962, 1.442695
      %v1974 = vpow.pop %v1973
      %v1975 = vmul.f32 %v1963, 1.442695
      %v1976 = vpow.pop %v1975
      %v1977 = vmul.f32 %v1964, 1.442695
      %v1978 = vpow.pop %v1977
      %v1979 = vmul.f32 %v1965, 1.442695
      %v1980 = vpow.pop %v1979
      %v1981 = vmul.f32 %v1966, 1.442695
      %v1982 = vpow.pop %v1981
      %v1983 = vsel %vm856, %v1968, 0.0
      %1984 = vadd.xlane.f32.xlu0 %v1983
      %v1985 = vpop.xlane.xlu0 %1984
      %v1986 = vsel %vm856, %v1970, 0.0
      %1987 = vadd.xlane.f32.xlu0 %v1986
      %v1988 = vpop.xlane.xlu0 %1987
      %v1989 = vsel %vm856, %v1972, 0.0
      %1990 = vadd.xlane.f32.xlu0 %v1989
      %v1991 = vpop.xlane.xlu0 %1990
      %v1992 = vsel %vm856, %v1974, 0.0
      %1993 = vadd.xlane.f32.xlu0 %v1992
      %v1994 = vpop.xlane.xlu0 %1993
      %v1995 = vsel %vm856, %v1976, 0.0
      %1996 = vadd.xlane.f32.xlu0 %v1995
      %v1997 = vpop.xlane.xlu0 %1996
      %v1998 = vsel %vm856, %v1978, 0.0
      %1999 = vadd.xlane.f32.xlu0 %v1998
      %v2000 = vpop.xlane.xlu0 %1999
      %v2001 = vsel %vm856, %v1980, 0.0
      %2002 = vadd.xlane.f32.xlu0 %v2001
      %v2003 = vpop.xlane.xlu0 %2002
      %v2004 = vsel %vm856, %v1982, 0.0
      %2005 = vadd.xlane.f32.xlu0 %v2004
      %v2006 = vpop.xlane.xlu0 %2005
      %v2007 = vrcp.pop %v1985
      %v2008 = vmul.f32 %v1968, %v2007
      %v2009 = vrcp.pop %v1988
      %v2010 = vmul.f32 %v1970, %v2009
      %v2011 = vrcp.pop %v1991
      %v2012 = vmul.f32 %v1972, %v2011
      %v2013 = vrcp.pop %v1994
      %v2014 = vmul.f32 %v1974, %v2013
      %v2015 = vrcp.pop %v1997
      %v2016 = vmul.f32 %v1976, %v2015
      %v2017 = vrcp.pop %v2000
      %v2018 = vmul.f32 %v1978, %v2017
      %v2019 = vrcp.pop %v2003
      %v2020 = vmul.f32 %v1980, %v2019
      %v2021 = vrcp.pop %v2006
      %v2022 = vmul.f32 %v1982, %v2021
      %2024 = vrot.lane.b32.xlu0 %v1789, 32
      %v2025 = vpop.permute.xlu0 %2024
      %v2027 = vmul.f32 %v639, %v2025
      %v2028 = vmul.f32 %v644, %v2025
      %v2029 = vmul.f32 %v649, %v2025
      %v2030 = vmul.f32 %v654, %v2025
      %v2031 = vmul.f32 %v659, %v2025
      %v2032 = vmul.f32 %v664, %v2025
      %v2033 = vmul.f32 %v669, %v2025
      %v2034 = vmul.f32 %v674, %v2025
      %2043 = vrot.lane.b32.xlu0 %v2027, 96
      %v2044 = vpop.permute.xlu0 %2043
      %2045 = vrot.lane.b32.xlu0 %v2028, 96
      %v2046 = vpop.permute.xlu0 %2045
      %2047 = vrot.lane.b32.xlu0 %v2029, 96
      %v2048 = vpop.permute.xlu0 %2047
      %2049 = vrot.lane.b32.xlu0 %v2030, 96
      %v2050 = vpop.permute.xlu0 %2049
      %2051 = vrot.lane.b32.xlu0 %v2031, 96
      %v2052 = vpop.permute.xlu0 %2051
      %2053 = vrot.lane.b32.xlu0 %v2032, 96
      %v2054 = vpop.permute.xlu0 %2053
      %2055 = vrot.lane.b32.xlu0 %v2033, 96
      %v2056 = vpop.permute.xlu0 %2055
      %2057 = vrot.lane.b32.xlu0 %v2034, 96
      %v2058 = vpop.permute.xlu0 %2057
      %v2068 = vsel %vm856, %v2008, 0
      %v2071 = vsel %vm856, %v2010, 0
      %v2074 = vsel %vm856, %v2012, 0
      %v2077 = vsel %vm856, %v2014, 0
      %v2080 = vsel %vm856, %v2016, 0
      %v2083 = vsel %vm856, %v2018, 0
      %v2086 = vsel %vm856, %v2020, 0
      %v2089 = vsel %vm856, %v2022, 0
      %2091 = vmatprep.subr.mxu0 0.0
      %2092 = vmatpush1.msra.mxu0 %v2044
      %2093 = vmatprep.subr.mxu0 0.0
      %2094 = vmatpush1.msra.mxu0 %v2046
      %2095 = vmatprep.subr.mxu0 0.0
      %2096 = vmatpush1.msra.mxu0 %v2048
      %2097 = vmatprep.subr.mxu0 0.0
      %2098 = vmatpush1.msra.mxu0 %v2050
      %2099 = vmatprep.subr.mxu0 0.0
      %2100 = vmatpush1.msra.mxu0 %v2052
      %2101 = vmatprep.subr.mxu0 0.0
      %2102 = vmatpush1.msra.mxu0 %v2054
      %2103 = vmatprep.subr.mxu0 0.0
      %2104 = vmatpush1.msra.mxu0 %v2056
      %2105 = vmatprep.subr.mxu0 0.0
      %2106 = vmatpush1.msra.mxu0 %v2058
      %2107 = vmatprep.subr.mxu0 0.0
      %2108 = vmatpush1.msra.mxu0 0.0
      %2109 = vmatprep.subr.mxu0 0.0
      %2110 = vmatpush1.msra.mxu0 0.0
      %2111 = vmatprep.subr.mxu0 0.0
      %2112 = vmatpush1.msra.mxu0 0.0
      %2113 = vmatprep.subr.mxu0 0.0
      %2114 = vmatpush1.msra.mxu0 0.0
      %2115 = vmatprep.subr.mxu0 0.0
      %2116 = vmatpush1.msra.mxu0 0.0
      %2117 = vmatprep.subr.mxu0 0.0
      %2118 = vmatpush1.msra.mxu0 0.0
      %2119 = vmatprep.subr.mxu0 0.0
      %2120 = vmatpush1.msra.mxu0 0.0
      %2121 = vmatprep.subr.mxu0 0.0
      %2122 = vmatpush1.msra.mxu0 0.0
      %2123 = vmatprep.subr.mxu0 0.0
      %2124 = vmatpush1.msra.mxu0 0.0
      %2125 = vmatprep.subr.mxu0 0.0
      %2126 = vmatpush1.msra.mxu0 0.0
      %2127 = vmatprep.subr.mxu0 0.0
      %2128 = vmatpush1.msra.mxu0 0.0
      %2129 = vmatprep.subr.mxu0 0.0
      %2130 = vmatpush1.msra.mxu0 0.0
      %2131 = vmatprep.subr.mxu0 0.0
      %2132 = vmatpush1.msra.mxu0 0.0
      %2133 = vmatprep.subr.mxu0 0.0
      %2134 = vmatpush1.msra.mxu0 0.0
      %2135 = vmatprep.subr.mxu0 0.0
      %2136 = vmatpush1.msra.mxu0 0.0
      %2137 = vmatprep.subr.mxu0 0.0
      %2138 = vmatpush1.msra.mxu0 0.0
      %2139 = vmatprep.subr.mxu0 0.0
      %2140 = vmatpush1.msra.mxu0 0.0
      %2141 = vmatprep.subr.mxu0 0.0
      %2142 = vmatpush1.msra.mxu0 0.0
      %2143 = vmatprep.subr.mxu0 0.0
      %2144 = vmatpush1.msra.mxu0 0.0
      %2145 = vmatprep.subr.mxu0 0.0
      %2146 = vmatpush1.msra.mxu0 0.0
      %2147 = vmatprep.subr.mxu0 0.0
      %2148 = vmatpush1.msra.mxu0 0.0
      %2149 = vmatprep.subr.mxu0 0.0
      %2150 = vmatpush1.msra.mxu0 0.0
      %2151 = vmatprep.subr.mxu0 0.0
      %2152 = vmatpush1.msra.mxu0 0.0
      %2153 = vmatprep.subr.mxu0 0.0
      %2154 = vmatpush1.msra.mxu0 0.0
      %2155 = vmatprep.mubr.f32.mxu0 0.0
      %2156 = vmatmul.mubr.f32.gmra.mrb[0].mxu0 %v2068
      %v2157 = vpop.f32.mrb[0].mxu0
      %v2158 = vadd.f32 0.0, %v2157
      %v2159 = vpop.f32.mrb[0].mxu0
      %2160 = vmatprep.mubr.f32.mxu0 0.0
      %2161 = vmatmul.mubr.f32.gmra.mrb[0].mxu0 %v2071
      %v2162 = vpop.f32.mrb[0].mxu0
      %v2163 = vadd.f32 0.0, %v2162
      %v2164 = vpop.f32.mrb[0].mxu0
      %2165 = vmatprep.mubr.f32.mxu0 0.0
      %2166 = vmatmul.mubr.f32.gmra.mrb[0].mxu0 %v2074
      %v2167 = vpop.f32.mrb[0].mxu0
      %v2168 = vadd.f32 0.0, %v2167
      %v2169 = vpop.f32.mrb[0].mxu0
      %2170 = vmatprep.mubr.f32.mxu0 0.0
      %2171 = vmatmul.mubr.f32.gmra.mrb[0].mxu0 %v2077
      %v2172 = vpop.f32.mrb[0].mxu0
      %v2173 = vadd.f32 0.0, %v2172
      %v2174 = vpop.f32.mrb[0].mxu0
      %2175 = vmatprep.mubr.f32.mxu0 0.0
      %2176 = vmatmul.mubr.f32.gmra.mrb[0].mxu0 %v2080
      %v2177 = vpop.f32.mrb[0].mxu0
      %v2178 = vadd.f32 0.0, %v2177
      %v2179 = vpop.f32.mrb[0].mxu0
      %2180 = vmatprep.mubr.f32.mxu0 0.0
      %2181 = vmatmul.mubr.f32.gmra.mrb[0].mxu0 %v2083
      %v2182 = vpop.f32.mrb[0].mxu0
      %v2183 = vadd.f32 0.0, %v2182
      %v2184 = vpop.f32.mrb[0].mxu0
      %2185 = vmatprep.mubr.f32.mxu0 0.0
      %2186 = vmatmul.mubr.f32.gmra.mrb[0].mxu0 %v2086
      %v2187 = vpop.f32.mrb[0].mxu0
      %v2188 = vadd.f32 0.0, %v2187
      %v2189 = vpop.f32.mrb[0].mxu0
      %2190 = vmatprep.mubr.f32.mxu0 0.0
      %2191 = vmatmul.mubr.f32.gmra.mrb[0].mxu0 %v2089
      %v2192 = vpop.f32.mrb[0].mxu0
      %v2193 = vadd.f32 0.0, %v2192
      %v2194 = vpop.f32.mrb[0].mxu0
      %2195 = vdwg.mxu0
      %v2197 = vsel %vm407, %v2158, 0
      %v2200 = vsel %vm407, %v2163, 0
      %v2203 = vsel %vm407, %v2168, 0
      %v2206 = vsel %vm407, %v2173, 0
      %v2209 = vsel %vm407, %v2178, 0
      %v2212 = vsel %vm407, %v2183, 0
      %v2215 = vsel %vm407, %v2188, 0
      %v2218 = vsel %vm407, %v2193, 0
      %2220 = vmatprep.subr.mxu0 0.0
      %2221 = vmatpush1.msra.mxu0 %v677
      %2222 = vmatprep.subr.mxu0 0.0
      %2223 = vmatpush1.msra.mxu0 %v678
      %2224 = vmatprep.subr.mxu0 0.0
      %2225 = vmatpush1.msra.mxu0 %v679
      %2226 = vmatprep.subr.mxu0 0.0
      %2227 = vmatpush1.msra.mxu0 %v680
      %2228 = vmatprep.subr.mxu0 0.0
      %2229 = vmatpush1.msra.mxu0 0.0
      %2230 = vmatprep.subr.mxu0 0.0
      %2231 = vmatpush1.msra.mxu0 0.0
      %2232 = vmatprep.subr.mxu0 0.0
      %2233 = vmatpush1.msra.mxu0 0.0
      %2234 = vmatprep.subr.mxu0 0.0
      %2235 = vmatpush1.msra.mxu0 0.0
      %2236 = vmatprep.subr.mxu0 0.0
      %2237 = vmatpush1.msra.mxu0 0.0
      %2238 = vmatprep.subr.mxu0 0.0
      %2239 = vmatpush1.msra.mxu0 0.0
      %2240 = vmatprep.subr.mxu0 0.0
      %2241 = vmatpush1.msra.mxu0 0.0
      %2242 = vmatprep.subr.mxu0 0.0
      %2243 = vmatpush1.msra.mxu0 0.0
      %2244 = vmatprep.subr.mxu0 0.0
      %2245 = vmatpush1.msra.mxu0 0.0
      %2246 = vmatprep.subr.mxu0 0.0
      %2247 = vmatpush1.msra.mxu0 0.0
      %2248 = vmatprep.subr.mxu0 0.0
      %2249 = vmatpush1.msra.mxu0 0.0
      %2250 = vmatprep.subr.mxu0 0.0
      %2251 = vmatpush1.msra.mxu0 0.0
      %2252 = vmatprep.subr.mxu0 0.0
      %2253 = vmatpush1.msra.mxu0 0.0
      %2254 = vmatprep.subr.mxu0 0.0
      %2255 = vmatpush1.msra.mxu0 0.0
      %2256 = vmatprep.subr.mxu0 0.0
      %2257 = vmatpush1.msra.mxu0 0.0
      %2258 = vmatprep.subr.mxu0 0.0
      %2259 = vmatpush1.msra.mxu0 0.0
      %2260 = vmatprep.subr.mxu0 0.0
      %2261 = vmatpush1.msra.mxu0 0.0
      %2262 = vmatprep.subr.mxu0 0.0
      %2263 = vmatpush1.msra.mxu0 0.0
      %2264 = vmatprep.subr.mxu0 0.0
      %2265 = vmatpush1.msra.mxu0 0.0
      %2266 = vmatprep.subr.mxu0 0.0
      %2267 = vmatpush1.msra.mxu0 0.0
      %2268 = vmatprep.subr.mxu0 0.0
      %2269 = vmatpush1.msra.mxu0 0.0
      %2270 = vmatprep.subr.mxu0 0.0
      %2271 = vmatpush1.msra.mxu0 0.0
      %2272 = vmatprep.subr.mxu0 0.0
      %2273 = vmatpush1.msra.mxu0 0.0
      %2274 = vmatprep.subr.mxu0 0.0
      %2275 = vmatpush1.msra.mxu0 0.0
      %2276 = vmatprep.subr.mxu0 0.0
      %2277 = vmatpush1.msra.mxu0 0.0
      %2278 = vmatprep.subr.mxu0 0.0
      %2279 = vmatpush1.msra.mxu0 0.0
      %2280 = vmatprep.subr.mxu0 0.0
      %2281 = vmatpush1.msra.mxu0 0.0
      %2282 = vmatprep.subr.mxu0 0.0
      %2283 = vmatpush1.msra.mxu0 0.0
      %2284 = vmatprep.mubr.f32.mxu0 0.0
      %2285 = vmatmul.mubr.f32.gmra.mrb[0].mxu0 %v2197
      %v2286 = vpop.f32.mrb[0].mxu0
      %v2287 = vadd.f32 0.0, %v2286
      %v2288 = vpop.f32.mrb[0].mxu0
      %2289 = vmatprep.mubr.f32.mxu0 0.0
      %2290 = vmatmul.mubr.f32.gmra.mrb[0].mxu0 %v2200
      %v2291 = vpop.f32.mrb[0].mxu0
      %v2292 = vadd.f32 0.0, %v2291
      %v2293 = vpop.f32.mrb[0].mxu0
      %2294 = vmatprep.mubr.f32.mxu0 0.0
      %2295 = vmatmul.mubr.f32.gmra.mrb[0].mxu0 %v2203
      %v2296 = vpop.f32.mrb[0].mxu0
      %v2297 = vadd.f32 0.0, %v2296
      %v2298 = vpop.f32.mrb[0].mxu0
      %2299 = vmatprep.mubr.f32.mxu0 0.0
      %2300 = vmatmul.mubr.f32.gmra.mrb[0].mxu0 %v2206
      %v2301 = vpop.f32.mrb[0].mxu0
      %v2302 = vadd.f32 0.0, %v2301
      %v2303 = vpop.f32.mrb[0].mxu0
      %2304 = vmatprep.mubr.f32.mxu0 0.0
      %2305 = vmatmul.mubr.f32.gmra.mrb[0].mxu0 %v2209
      %v2306 = vpop.f32.mrb[0].mxu0
      %v2307 = vadd.f32 0.0, %v2306
      %v2308 = vpop.f32.mrb[0].mxu0
      %2309 = vmatprep.mubr.f32.mxu0 0.0
      %2310 = vmatmul.mubr.f32.gmra.mrb[0].mxu0 %v2212
      %v2311 = vpop.f32.mrb[0].mxu0
      %v2312 = vadd.f32 0.0, %v2311
      %v2313 = vpop.f32.mrb[0].mxu0
      %2314 = vmatprep.mubr.f32.mxu0 0.0
      %2315 = vmatmul.mubr.f32.gmra.mrb[0].mxu0 %v2215
      %v2316 = vpop.f32.mrb[0].mxu0
      %v2317 = vadd.f32 0.0, %v2316
      %v2318 = vpop.f32.mrb[0].mxu0
      %2319 = vmatprep.mubr.f32.mxu0 0.0
      %2320 = vmatmul.mubr.f32.gmra.mrb[0].mxu0 %v2218
      %v2321 = vpop.f32.mrb[0].mxu0
      %v2322 = vadd.f32 0.0, %v2321
      %v2323 = vpop.f32.mrb[0].mxu0
      %2324 = vdwg.mxu0
      %v2325 = vadd.f32 %v1748, %v2287
      %v2326 = vadd.f32 %v1753, %v2292
      %v2327 = vadd.f32 %v1758, %v2297
      %v2328 = vadd.f32 %v1763, %v2302
      %v2329 = vadd.f32 %v1768, %v2307
      %v2330 = vadd.f32 %v1773, %v2312
      %v2331 = vadd.f32 %v1778, %v2317
      %v2332 = vadd.f32 %v1783, %v2322
      %vm2333 = vcmp.ge.s32.totalorder %v682, 24
      %vm2334 = vcmp.lt.s32.totalorder %v682, 32
      %vm2335 = vmand %vm2333, %vm2334
      %v2336 = vsel %vm2335, 1.0, 0.0
      %v2337 = vmul.f32 %v499, %v2336
      %v2338 = vmul.f32 %v504, %v2336
      %v2339 = vmul.f32 %v509, %v2336
      %v2340 = vmul.f32 %v514, %v2336
      %v2341 = vmul.f32 %v519, %v2336
      %v2342 = vmul.f32 %v524, %v2336
      %v2343 = vmul.f32 %v529, %v2336
      %v2344 = vmul.f32 %v534, %v2336
      %v2346 = vsel %vm407, %v2337, 0
      %v2349 = vsel %vm407, %v2338, 0
      %v2352 = vsel %vm407, %v2339, 0
      %v2355 = vsel %vm407, %v2340, 0
      %v2358 = vsel %vm407, %v2341, 0
      %v2361 = vsel %vm407, %v2342, 0
      %v2364 = vsel %vm407, %v2343, 0
      %v2367 = vsel %vm407, %v2344, 0
      %2369 = vmatprep.subr.mxu0 0.0
      %2370 = vmatpush1.xpose.msra.mxu0 %v720
      %2371 = vmatprep.subr.mxu0 0.0
      %2372 = vmatpush1.xpose.msra.mxu0 %v723
      %2373 = vmatprep.subr.mxu0 0.0
      %2374 = vmatpush1.xpose.msra.mxu0 %v726
      %2375 = vmatprep.subr.mxu0 0.0
      %2376 = vmatpush1.xpose.msra.mxu0 %v729
      %2377 = vmatprep.subr.mxu0 0.0
      %2378 = vmatpush1.xpose.msra.mxu0 %v732
      %2379 = vmatprep.subr.mxu0 0.0
      %2380 = vmatpush1.xpose.msra.mxu0 %v735
      %2381 = vmatprep.subr.mxu0 0.0
      %2382 = vmatpush1.xpose.msra.mxu0 %v738
      %2383 = vmatprep.subr.mxu0 0.0
      %2384 = vmatpush1.xpose.msra.mxu0 %v741
      %2385 = vmatprep.subr.mxu0 0.0
      %2386 = vmatpush1.xpose.msra.mxu0 0.0
      %2387 = vmatprep.subr.mxu0 0.0
      %2388 = vmatpush1.xpose.msra.mxu0 0.0
      %2389 = vmatprep.subr.mxu0 0.0
      %2390 = vmatpush1.xpose.msra.mxu0 0.0
      %2391 = vmatprep.subr.mxu0 0.0
      %2392 = vmatpush1.xpose.msra.mxu0 0.0
      %2393 = vmatprep.subr.mxu0 0.0
      %2394 = vmatpush1.xpose.msra.mxu0 0.0
      %2395 = vmatprep.subr.mxu0 0.0
      %2396 = vmatpush1.xpose.msra.mxu0 0.0
      %2397 = vmatprep.subr.mxu0 0.0
      %2398 = vmatpush1.xpose.msra.mxu0 0.0
      %2399 = vmatprep.subr.mxu0 0.0
      %2400 = vmatpush1.xpose.msra.mxu0 0.0
      %2401 = vmatprep.subr.mxu0 0.0
      %2402 = vmatpush1.xpose.msra.mxu0 0.0
      %2403 = vmatprep.subr.mxu0 0.0
      %2404 = vmatpush1.xpose.msra.mxu0 0.0
      %2405 = vmatprep.subr.mxu0 0.0
      %2406 = vmatpush1.xpose.msra.mxu0 0.0
      %2407 = vmatprep.subr.mxu0 0.0
      %2408 = vmatpush1.xpose.msra.mxu0 0.0
      %2409 = vmatprep.subr.mxu0 0.0
      %2410 = vmatpush1.xpose.msra.mxu0 0.0
      %2411 = vmatprep.subr.mxu0 0.0
      %2412 = vmatpush1.xpose.msra.mxu0 0.0
      %2413 = vmatprep.subr.mxu0 0.0
      %2414 = vmatpush1.xpose.msra.mxu0 0.0
      %2415 = vmatprep.subr.mxu0 0.0
      %2416 = vmatpush1.xpose.msra.mxu0 0.0
      %2417 = vmatprep.subr.mxu0 0.0
      %2418 = vmatpush1.xpose.msra.mxu0 0.0
      %2419 = vmatprep.subr.mxu0 0.0
      %2420 = vmatpush1.xpose.msra.mxu0 0.0
      %2421 = vmatprep.subr.mxu0 0.0
      %2422 = vmatpush1.xpose.msra.mxu0 0.0
      %2423 = vmatprep.subr.mxu0 0.0
      %2424 = vmatpush1.xpose.msra.mxu0 0.0
      %2425 = vmatprep.subr.mxu0 0.0
      %2426 = vmatpush1.xpose.msra.mxu0 0.0
      %2427 = vmatprep.subr.mxu0 0.0
      %2428 = vmatpush1.xpose.msra.mxu0 0.0
      %2429 = vmatprep.subr.mxu0 0.0
      %2430 = vmatpush1.xpose.msra.mxu0 0.0
      %2431 = vmatprep.subr.mxu0 0.0
      %2432 = vmatpush1.xpose.msra.mxu0 0.0
      %2433 = vmatprep.mubr.f32.mxu0 0.0
      %2434 = vmatmul.mubr.f32.gmra.mrb[0].mxu0 %v2346
      %v2435 = vpop.f32.mrb[0].mxu0
      %v2436 = vadd.f32 0.0, %v2435
      %v2437 = vpop.f32.mrb[0].mxu0
      %2438 = vmatprep.mubr.f32.mxu0 0.0
      %2439 = vmatmul.mubr.f32.gmra.mrb[0].mxu0 %v2349
      %v2440 = vpop.f32.mrb[0].mxu0
      %v2441 = vadd.f32 0.0, %v2440
      %v2442 = vpop.f32.mrb[0].mxu0
      %2443 = vmatprep.mubr.f32.mxu0 0.0
      %2444 = vmatmul.mubr.f32.gmra.mrb[0].mxu0 %v2352
      %v2445 = vpop.f32.mrb[0].mxu0
      %v2446 = vadd.f32 0.0, %v2445
      %v2447 = vpop.f32.mrb[0].mxu0
      %2448 = vmatprep.mubr.f32.mxu0 0.0
      %2449 = vmatmul.mubr.f32.gmra.mrb[0].mxu0 %v2355
      %v2450 = vpop.f32.mrb[0].mxu0
      %v2451 = vadd.f32 0.0, %v2450
      %v2452 = vpop.f32.mrb[0].mxu0
      %2453 = vmatprep.mubr.f32.mxu0 0.0
      %2454 = vmatmul.mubr.f32.gmra.mrb[0].mxu0 %v2358
      %v2455 = vpop.f32.mrb[0].mxu0
      %v2456 = vadd.f32 0.0, %v2455
      %v2457 = vpop.f32.mrb[0].mxu0
      %2458 = vmatprep.mubr.f32.mxu0 0.0
      %2459 = vmatmul.mubr.f32.gmra.mrb[0].mxu0 %v2361
      %v2460 = vpop.f32.mrb[0].mxu0
      %v2461 = vadd.f32 0.0, %v2460
      %v2462 = vpop.f32.mrb[0].mxu0
      %2463 = vmatprep.mubr.f32.mxu0 0.0
      %2464 = vmatmul.mubr.f32.gmra.mrb[0].mxu0 %v2364
      %v2465 = vpop.f32.mrb[0].mxu0
      %v2466 = vadd.f32 0.0, %v2465
      %v2467 = vpop.f32.mrb[0].mxu0
      %2468 = vmatprep.mubr.f32.mxu0 0.0
      %2469 = vmatmul.mubr.f32.gmra.mrb[0].mxu0 %v2367
      %v2470 = vpop.f32.mrb[0].mxu0
      %v2471 = vadd.f32 0.0, %v2470
      %v2472 = vpop.f32.mrb[0].mxu0
      %2473 = vdwg.mxu0
      %v2474 = vmul.f32 %v2436, 0.35355338
      %v2475 = vmul.f32 %v2441, 0.35355338
      %v2476 = vmul.f32 %v2446, 0.35355338
      %v2477 = vmul.f32 %v2451, 0.35355338
      %v2478 = vmul.f32 %v2456, 0.35355338
      %v2479 = vmul.f32 %v2461, 0.35355338
      %v2480 = vmul.f32 %v2466, 0.35355338
      %v2481 = vmul.f32 %v2471, 0.35355338
      %v2482 = vsel %vm856, %v2474, -inf
      %2483 = vmax.xlane.f32.xlu0 %v2482
      %v2484 = vpop.xlane.xlu0 %2483
      %v2485 = vsel %vm856, %v2475, -inf
      %2486 = vmax.xlane.f32.xlu0 %v2485
      %v2487 = vpop.xlane.xlu0 %2486
      %v2488 = vsel %vm856, %v2476, -inf
      %2489 = vmax.xlane.f32.xlu0 %v2488
      %v2490 = vpop.xlane.xlu0 %2489
      %v2491 = vsel %vm856, %v2477, -inf
      %2492 = vmax.xlane.f32.xlu0 %v2491
      %v2493 = vpop.xlane.xlu0 %2492
      %v2494 = vsel %vm856, %v2478, -inf
      %2495 = vmax.xlane.f32.xlu0 %v2494
      %v2496 = vpop.xlane.xlu0 %2495
      %v2497 = vsel %vm856, %v2479, -inf
      %2498 = vmax.xlane.f32.xlu0 %v2497
      %v2499 = vpop.xlane.xlu0 %2498
      %v2500 = vsel %vm856, %v2480, -inf
      %2501 = vmax.xlane.f32.xlu0 %v2500
      %v2502 = vpop.xlane.xlu0 %2501
      %v2503 = vsel %vm856, %v2481, -inf
      %2504 = vmax.xlane.f32.xlu0 %v2503
      %v2505 = vpop.xlane.xlu0 %2504
      %v2506 = vsub.f32 %v2474, %v2484
      %v2507 = vsub.f32 %v2475, %v2487
      %v2508 = vsub.f32 %v2476, %v2490
      %v2509 = vsub.f32 %v2477, %v2493
      %v2510 = vsub.f32 %v2478, %v2496
      %v2511 = vsub.f32 %v2479, %v2499
      %v2512 = vsub.f32 %v2480, %v2502
      %v2513 = vsub.f32 %v2481, %v2505
      %v2514 = vmul.f32 %v2506, 1.442695
      %v2515 = vpow.pop %v2514
      %v2516 = vmul.f32 %v2507, 1.442695
      %v2517 = vpow.pop %v2516
      %v2518 = vmul.f32 %v2508, 1.442695
      %v2519 = vpow.pop %v2518
      %v2520 = vmul.f32 %v2509, 1.442695
      %v2521 = vpow.pop %v2520
      %v2522 = vmul.f32 %v2510, 1.442695
      %v2523 = vpow.pop %v2522
      %v2524 = vmul.f32 %v2511, 1.442695
      %v2525 = vpow.pop %v2524
      %v2526 = vmul.f32 %v2512, 1.442695
      %v2527 = vpow.pop %v2526
      %v2528 = vmul.f32 %v2513, 1.442695
      %v2529 = vpow.pop %v2528
      %v2530 = vsel %vm856, %v2515, 0.0
      %2531 = vadd.xlane.f32.xlu0 %v2530
      %v2532 = vpop.xlane.xlu0 %2531
      %v2533 = vsel %vm856, %v2517, 0.0
      %2534 = vadd.xlane.f32.xlu0 %v2533
      %v2535 = vpop.xlane.xlu0 %2534
      %v2536 = vsel %vm856, %v2519, 0.0
      %2537 = vadd.xlane.f32.xlu0 %v2536
      %v2538 = vpop.xlane.xlu0 %2537
      %v2539 = vsel %vm856, %v2521, 0.0
      %2540 = vadd.xlane.f32.xlu0 %v2539
      %v2541 = vpop.xlane.xlu0 %2540
      %v2542 = vsel %vm856, %v2523, 0.0
      %2543 = vadd.xlane.f32.xlu0 %v2542
      %v2544 = vpop.xlane.xlu0 %2543
      %v2545 = vsel %vm856, %v2525, 0.0
      %2546 = vadd.xlane.f32.xlu0 %v2545
      %v2547 = vpop.xlane.xlu0 %2546
      %v2548 = vsel %vm856, %v2527, 0.0
      %2549 = vadd.xlane.f32.xlu0 %v2548
      %v2550 = vpop.xlane.xlu0 %2549
      %v2551 = vsel %vm856, %v2529, 0.0
      %2552 = vadd.xlane.f32.xlu0 %v2551
      %v2553 = vpop.xlane.xlu0 %2552
      %v2554 = vrcp.pop %v2532
      %v2555 = vmul.f32 %v2515, %v2554
      %v2556 = vrcp.pop %v2535
      %v2557 = vmul.f32 %v2517, %v2556
      %v2558 = vrcp.pop %v2538
      %v2559 = vmul.f32 %v2519, %v2558
      %v2560 = vrcp.pop %v2541
      %v2561 = vmul.f32 %v2521, %v2560
      %v2562 = vrcp.pop %v2544
      %v2563 = vmul.f32 %v2523, %v2562
      %v2564 = vrcp.pop %v2547
      %v2565 = vmul.f32 %v2525, %v2564
      %v2566 = vrcp.pop %v2550
      %v2567 = vmul.f32 %v2527, %v2566
      %v2568 = vrcp.pop %v2553
      %v2569 = vmul.f32 %v2529, %v2568
      %2571 = vrot.lane.b32.xlu0 %v2336, 32
      %v2572 = vpop.permute.xlu0 %2571
      %v2574 = vmul.f32 %v639, %v2572
      %v2575 = vmul.f32 %v644, %v2572
      %v2576 = vmul.f32 %v649, %v2572
      %v2577 = vmul.f32 %v654, %v2572
      %v2578 = vmul.f32 %v659, %v2572
      %v2579 = vmul.f32 %v664, %v2572
      %v2580 = vmul.f32 %v669, %v2572
      %v2581 = vmul.f32 %v674, %v2572
      %2590 = vrot.lane.b32.xlu0 %v2574, 96
      %v2591 = vpop.permute.xlu0 %2590
      %2592 = vrot.lane.b32.xlu0 %v2575, 96
      %v2593 = vpop.permute.xlu0 %2592
      %2594 = vrot.lane.b32.xlu0 %v2576, 96
      %v2595 = vpop.permute.xlu0 %2594
      %2596 = vrot.lane.b32.xlu0 %v2577, 96
      %v2597 = vpop.permute.xlu0 %2596
      %2598 = vrot.lane.b32.xlu0 %v2578, 96
      %v2599 = vpop.permute.xlu0 %2598
      %2600 = vrot.lane.b32.xlu0 %v2579, 96
      %v2601 = vpop.permute.xlu0 %2600
      %2602 = vrot.lane.b32.xlu0 %v2580, 96
      %v2603 = vpop.permute.xlu0 %2602
      %2604 = vrot.lane.b32.xlu0 %v2581, 96
      %v2605 = vpop.permute.xlu0 %2604
      %v2615 = vsel %vm856, %v2555, 0
      %v2618 = vsel %vm856, %v2557, 0
      %v2621 = vsel %vm856, %v2559, 0
      %v2624 = vsel %vm856, %v2561, 0
      %v2627 = vsel %vm856, %v2563, 0
      %v2630 = vsel %vm856, %v2565, 0
      %v2633 = vsel %vm856, %v2567, 0
      %v2636 = vsel %vm856, %v2569, 0
      %2638 = vmatprep.subr.mxu0 0.0
      %2639 = vmatpush1.msra.mxu0 %v2591
      %2640 = vmatprep.subr.mxu0 0.0
      %2641 = vmatpush1.msra.mxu0 %v2593
      %2642 = vmatprep.subr.mxu0 0.0
      %2643 = vmatpush1.msra.mxu0 %v2595
      %2644 = vmatprep.subr.mxu0 0.0
      %2645 = vmatpush1.msra.mxu0 %v2597
      %2646 = vmatprep.subr.mxu0 0.0
      %2647 = vmatpush1.msra.mxu0 %v2599
      %2648 = vmatprep.subr.mxu0 0.0
      %2649 = vmatpush1.msra.mxu0 %v2601
      %2650 = vmatprep.subr.mxu0 0.0
      %2651 = vmatpush1.msra.mxu0 %v2603
      %2652 = vmatprep.subr.mxu0 0.0
      %2653 = vmatpush1.msra.mxu0 %v2605
      %2654 = vmatprep.subr.mxu0 0.0
      %2655 = vmatpush1.msra.mxu0 0.0
      %2656 = vmatprep.subr.mxu0 0.0
      %2657 = vmatpush1.msra.mxu0 0.0
      %2658 = vmatprep.subr.mxu0 0.0
      %2659 = vmatpush1.msra.mxu0 0.0
      %2660 = vmatprep.subr.mxu0 0.0
      %2661 = vmatpush1.msra.mxu0 0.0
      %2662 = vmatprep.subr.mxu0 0.0
      %2663 = vmatpush1.msra.mxu0 0.0
      %2664 = vmatprep.subr.mxu0 0.0
      %2665 = vmatpush1.msra.mxu0 0.0
      %2666 = vmatprep.subr.mxu0 0.0
      %2667 = vmatpush1.msra.mxu0 0.0
      %2668 = vmatprep.subr.mxu0 0.0
      %2669 = vmatpush1.msra.mxu0 0.0
      %2670 = vmatprep.subr.mxu0 0.0
      %2671 = vmatpush1.msra.mxu0 0.0
      %2672 = vmatprep.subr.mxu0 0.0
      %2673 = vmatpush1.msra.mxu0 0.0
      %2674 = vmatprep.subr.mxu0 0.0
      %2675 = vmatpush1.msra.mxu0 0.0
      %2676 = vmatprep.subr.mxu0 0.0
      %2677 = vmatpush1.msra.mxu0 0.0
      %2678 = vmatprep.subr.mxu0 0.0
      %2679 = vmatpush1.msra.mxu0 0.0
      %2680 = vmatprep.subr.mxu0 0.0
      %2681 = vmatpush1.msra.mxu0 0.0
      %2682 = vmatprep.subr.mxu0 0.0
      %2683 = vmatpush1.msra.mxu0 0.0
      %2684 = vmatprep.subr.mxu0 0.0
      %2685 = vmatpush1.msra.mxu0 0.0
      %2686 = vmatprep.subr.mxu0 0.0
      %2687 = vmatpush1.msra.mxu0 0.0
      %2688 = vmatprep.subr.mxu0 0.0
      %2689 = vmatpush1.msra.mxu0 0.0
      %2690 = vmatprep.subr.mxu0 0.0
      %2691 = vmatpush1.msra.mxu0 0.0
      %2692 = vmatprep.subr.mxu0 0.0
      %2693 = vmatpush1.msra.mxu0 0.0
      %2694 = vmatprep.subr.mxu0 0.0
      %2695 = vmatpush1.msra.mxu0 0.0
      %2696 = vmatprep.subr.mxu0 0.0
      %2697 = vmatpush1.msra.mxu0 0.0
      %2698 = vmatprep.subr.mxu0 0.0
      %2699 = vmatpush1.msra.mxu0 0.0
      %2700 = vmatprep.subr.mxu0 0.0
      %2701 = vmatpush1.msra.mxu0 0.0
      %2702 = vmatprep.mubr.f32.mxu0 0.0
      %2703 = vmatmul.mubr.f32.gmra.mrb[0].mxu0 %v2615
      %v2704 = vpop.f32.mrb[0].mxu0
      %v2705 = vadd.f32 0.0, %v2704
      %v2706 = vpop.f32.mrb[0].mxu0
      %2707 = vmatprep.mubr.f32.mxu0 0.0
      %2708 = vmatmul.mubr.f32.gmra.mrb[0].mxu0 %v2618
      %v2709 = vpop.f32.mrb[0].mxu0
      %v2710 = vadd.f32 0.0, %v2709
      %v2711 = vpop.f32.mrb[0].mxu0
      %2712 = vmatprep.mubr.f32.mxu0 0.0
      %2713 = vmatmul.mubr.f32.gmra.mrb[0].mxu0 %v2621
      %v2714 = vpop.f32.mrb[0].mxu0
      %v2715 = vadd.f32 0.0, %v2714
      %v2716 = vpop.f32.mrb[0].mxu0
      %2717 = vmatprep.mubr.f32.mxu0 0.0
      %2718 = vmatmul.mubr.f32.gmra.mrb[0].mxu0 %v2624
      %v2719 = vpop.f32.mrb[0].mxu0
      %v2720 = vadd.f32 0.0, %v2719
      %v2721 = vpop.f32.mrb[0].mxu0
      %2722 = vmatprep.mubr.f32.mxu0 0.0
      %2723 = vmatmul.mubr.f32.gmra.mrb[0].mxu0 %v2627
      %v2724 = vpop.f32.mrb[0].mxu0
      %v2725 = vadd.f32 0.0, %v2724
      %v2726 = vpop.f32.mrb[0].mxu0
      %2727 = vmatprep.mubr.f32.mxu0 0.0
      %2728 = vmatmul.mubr.f32.gmra.mrb[0].mxu0 %v2630
      %v2729 = vpop.f32.mrb[0].mxu0
      %v2730 = vadd.f32 0.0, %v2729
      %v2731 = vpop.f32.mrb[0].mxu0
      %2732 = vmatprep.mubr.f32.mxu0 0.0
      %2733 = vmatmul.mubr.f32.gmra.mrb[0].mxu0 %v2633
      %v2734 = vpop.f32.mrb[0].mxu0
      %v2735 = vadd.f32 0.0, %v2734
      %v2736 = vpop.f32.mrb[0].mxu0
      %2737 = vmatprep.mubr.f32.mxu0 0.0
      %2738 = vmatmul.mubr.f32.gmra.mrb[0].mxu0 %v2636
      %v2739 = vpop.f32.mrb[0].mxu0
      %v2740 = vadd.f32 0.0, %v2739
      %v2741 = vpop.f32.mrb[0].mxu0
      %2742 = vdwg.mxu0
      %v2744 = vsel %vm407, %v2705, 0
      %v2747 = vsel %vm407, %v2710, 0
      %v2750 = vsel %vm407, %v2715, 0
      %v2753 = vsel %vm407, %v2720, 0
      %v2756 = vsel %vm407, %v2725, 0
      %v2759 = vsel %vm407, %v2730, 0
      %v2762 = vsel %vm407, %v2735, 0
      %v2765 = vsel %vm407, %v2740, 0
      %2767 = vmatprep.subr.mxu0 0.0
      %2768 = vmatpush1.msra.mxu0 %v677
      %2769 = vmatprep.subr.mxu0 0.0
      %2770 = vmatpush1.msra.mxu0 %v678
      %2771 = vmatprep.subr.mxu0 0.0
      %2772 = vmatpush1.msra.mxu0 %v679
      %2773 = vmatprep.subr.mxu0 0.0
      %2774 = vmatpush1.msra.mxu0 %v680
      %2775 = vmatprep.subr.mxu0 0.0
      %2776 = vmatpush1.msra.mxu0 0.0
      %2777 = vmatprep.subr.mxu0 0.0
      %2778 = vmatpush1.msra.mxu0 0.0
      %2779 = vmatprep.subr.mxu0 0.0
      %2780 = vmatpush1.msra.mxu0 0.0
      %2781 = vmatprep.subr.mxu0 0.0
      %2782 = vmatpush1.msra.mxu0 0.0
      %2783 = vmatprep.subr.mxu0 0.0
      %2784 = vmatpush1.msra.mxu0 0.0
      %2785 = vmatprep.subr.mxu0 0.0
      %2786 = vmatpush1.msra.mxu0 0.0
      %2787 = vmatprep.subr.mxu0 0.0
      %2788 = vmatpush1.msra.mxu0 0.0
      %2789 = vmatprep.subr.mxu0 0.0
      %2790 = vmatpush1.msra.mxu0 0.0
      %2791 = vmatprep.subr.mxu0 0.0
      %2792 = vmatpush1.msra.mxu0 0.0
      %2793 = vmatprep.subr.mxu0 0.0
      %2794 = vmatpush1.msra.mxu0 0.0
      %2795 = vmatprep.subr.mxu0 0.0
      %2796 = vmatpush1.msra.mxu0 0.0
      %2797 = vmatprep.subr.mxu0 0.0
      %2798 = vmatpush1.msra.mxu0 0.0
      %2799 = vmatprep.subr.mxu0 0.0
      %2800 = vmatpush1.msra.mxu0 0.0
      %2801 = vmatprep.subr.mxu0 0.0
      %2802 = vmatpush1.msra.mxu0 0.0
      %2803 = vmatprep.subr.mxu0 0.0
      %2804 = vmatpush1.msra.mxu0 0.0
      %2805 = vmatprep.subr.mxu0 0.0
      %2806 = vmatpush1.msra.mxu0 0.0
      %2807 = vmatprep.subr.mxu0 0.0
      %2808 = vmatpush1.msra.mxu0 0.0
      %2809 = vmatprep.subr.mxu0 0.0
      %2810 = vmatpush1.msra.mxu0 0.0
      %2811 = vmatprep.subr.mxu0 0.0
      %2812 = vmatpush1.msra.mxu0 0.0
      %2813 = vmatprep.subr.mxu0 0.0
      %2814 = vmatpush1.msra.mxu0 0.0
      %2815 = vmatprep.subr.mxu0 0.0
      %2816 = vmatpush1.msra.mxu0 0.0
      %2817 = vmatprep.subr.mxu0 0.0
      %2818 = vmatpush1.msra.mxu0 0.0
      %2819 = vmatprep.subr.mxu0 0.0
      %2820 = vmatpush1.msra.mxu0 0.0
      %2821 = vmatprep.subr.mxu0 0.0
      %2822 = vmatpush1.msra.mxu0 0.0
      %2823 = vmatprep.subr.mxu0 0.0
      %2824 = vmatpush1.msra.mxu0 0.0
      %2825 = vmatprep.subr.mxu0 0.0
      %2826 = vmatpush1.msra.mxu0 0.0
      %2827 = vmatprep.subr.mxu0 0.0
      %2828 = vmatpush1.msra.mxu0 0.0
      %2829 = vmatprep.subr.mxu0 0.0
      %2830 = vmatpush1.msra.mxu0 0.0
      %2831 = vmatprep.mubr.f32.mxu0 0.0
      %2832 = vmatmul.mubr.f32.gmra.mrb[0].mxu0 %v2744
      %v2833 = vpop.f32.mrb[0].mxu0
      %v2834 = vadd.f32 0.0, %v2833
      %v2835 = vpop.f32.mrb[0].mxu0
      %2836 = vmatprep.mubr.f32.mxu0 0.0
      %2837 = vmatmul.mubr.f32.gmra.mrb[0].mxu0 %v2747
      %v2838 = vpop.f32.mrb[0].mxu0
      %v2839 = vadd.f32 0.0, %v2838
      %v2840 = vpop.f32.mrb[0].mxu0
      %2841 = vmatprep.mubr.f32.mxu0 0.0
      %2842 = vmatmul.mubr.f32.gmra.mrb[0].mxu0 %v2750
      %v2843 = vpop.f32.mrb[0].mxu0
      %v2844 = vadd.f32 0.0, %v2843
      %v2845 = vpop.f32.mrb[0].mxu0
      %2846 = vmatprep.mubr.f32.mxu0 0.0
      %2847 = vmatmul.mubr.f32.gmra.mrb[0].mxu0 %v2753
      %v2848 = vpop.f32.mrb[0].mxu0
      %v2849 = vadd.f32 0.0, %v2848
      %v2850 = vpop.f32.mrb[0].mxu0
      %2851 = vmatprep.mubr.f32.mxu0 0.0
      %2852 = vmatmul.mubr.f32.gmra.mrb[0].mxu0 %v2756
      %v2853 = vpop.f32.mrb[0].mxu0
      %v2854 = vadd.f32 0.0, %v2853
      %v2855 = vpop.f32.mrb[0].mxu0
      %2856 = vmatprep.mubr.f32.mxu0 0.0
      %2857 = vmatmul.mubr.f32.gmra.mrb[0].mxu0 %v2759
      %v2858 = vpop.f32.mrb[0].mxu0
      %v2859 = vadd.f32 0.0, %v2858
      %v2860 = vpop.f32.mrb[0].mxu0
      %2861 = vmatprep.mubr.f32.mxu0 0.0
      %2862 = vmatmul.mubr.f32.gmra.mrb[0].mxu0 %v2762
      %v2863 = vpop.f32.mrb[0].mxu0
      %v2864 = vadd.f32 0.0, %v2863
      %v2865 = vpop.f32.mrb[0].mxu0
      %2866 = vmatprep.mubr.f32.mxu0 0.0
      %2867 = vmatmul.mubr.f32.gmra.mrb[0].mxu0 %v2765
      %v2868 = vpop.f32.mrb[0].mxu0
      %v2869 = vadd.f32 0.0, %v2868
      %v2870 = vpop.f32.mrb[0].mxu0
      %2871 = vdwg.mxu0
      %v2872 = vadd.f32 %v2325, %v2834
      %v2873 = vadd.f32 %v2326, %v2839
      %v2874 = vadd.f32 %v2327, %v2844
      %v2875 = vadd.f32 %v2328, %v2849
      %v2876 = vadd.f32 %v2329, %v2854
      %v2877 = vadd.f32 %v2330, %v2859
      %v2878 = vadd.f32 %v2331, %v2864
      %v2879 = vadd.f32 %v2332, %v2869
      %v2880 = vld [vmem:[%s9] sm:$0x1]
      %v2882 = vlaneseq
      %v2883 = vshrl.u32 %v2882, 7
      %v2884 = vsub.s32 0, %v2883
      %v2885 = vrot.slane %v2880, %v2884
      %v2887 = vadd.f32 %v2872, %v2885
      %v2888 = vadd.f32 %v2873, %v2885
      %v2889 = vadd.f32 %v2874, %v2885
      %v2890 = vadd.f32 %v2875, %v2885
      %v2891 = vadd.f32 %v2876, %v2885
      %v2892 = vadd.f32 %v2877, %v2885
      %v2893 = vadd.f32 %v2878, %v2885
      %v2894 = vadd.f32 %v2879, %v2885
      %2895 = vst.msk [vmem:[%s379] sm:$0xff] %vm407, %v2887
      %2896 = vst.msk [vmem:[%s379 + $0x8] sm:$0xff] %vm407, %v2888
      %2897 = vst.msk [vmem:[%s379 + $0x10] sm:$0xff] %vm407, %v2889
      %2898 = vst.msk [vmem:[%s379 + $0x18] sm:$0xff] %vm407, %v2890
      %2899 = vst.msk [vmem:[%s379 + $0x20] sm:$0xff] %vm407, %v2891
      %2900 = vst.msk [vmem:[%s379 + $0x28] sm:$0xff] %vm407, %v2892
      %2901 = vst.msk [vmem:[%s379 + $0x30] sm:$0xff] %vm407, %v2893
      %2902 = vst.msk [vmem:[%s379 + $0x38] sm:$0xff] %vm407, %v2894
      %p2903 = scmp.lt.s32.totalorder %s21, 1
      %s2904 = scalar_select %p2903, %s21, 1
      %s2905 = smul.addr %s2904, 8
      %s2906 = smul.addr %s2905, 8
      %s2907 = scalar_lea.vmem %s10, %s2906
      // Predicated region
      $region61: #{tpu_custom_call.1} parent=59 // pred_check
        %p2908 = pneg %p259
      $region62: #{tpu_custom_call.1} parent=59 // pred_check_branch
        %2910 = sbr.rel (%p2908) target = $region64
      $region63: #{tpu_custom_call.1} parent=59 // pred_region
        _
      $region64: #{tpu_custom_call.1} parent=59 // pred_fallthru
        _
    $region60: #{tpu_custom_call.1} parent=5 // pred_fallthru
      _
    %p2911 = scmp.le.s32.totalorder 2, %s16
    // Predicated region
    $region65: #{tpu_custom_call.1} parent=5 // pred_check
      %p2912 = pneg %p2911
    $region66: #{tpu_custom_call.1} parent=5 // pred_check_branch
      %2914 = sbr.rel (%p2912) target = $region68
    $region67: #{tpu_custom_call.1} parent=5 // pred_region
      %s2915 = ssub.s32 %s16, 2
      // Predicated region
      $region69: #{tpu_custom_call.1} parent=67 // pred_check
        %p2916 = pneg %p265
      $region70: #{tpu_custom_call.1} parent=67 // pred_check_branch
        %2918 = sbr.rel (%p2916) target = $region72
      $region71: #{tpu_custom_call.1} parent=67 // pred_region
        %p2919 = scmp.lt.s32.totalorder %s22, 1
        %s2920 = scalar_select %p2919, %s22, 1
        %s2921 = smul.addr %s2920, 8
        %s2922 = smul.addr %s2921, 8
        %s2923 = scalar_lea.vmem %s10, %s2922
      $region72: #{tpu_custom_call.1} parent=67 // pred_fallthru
        _
    $region68: #{tpu_custom_call.1} parent=5 // pred_fallthru
      _
  $region6: #{tpu_custom_call.1} parent=0 // loop_footer
    %s20 = sadd.s32 1, %s16
  $region7: #{tpu_custom_call.1} parent=0 // loop_footer_branch
    %15 = sbr.rel target = $region3
  $region8: #{tpu_custom_call.1} parent=0 // loop_exit
    _

</llo_original>
